<compile_context>
chip_gen: v5e
topology: v5e:2x2
jax: 0.10.0
libtpu: 0.0.40
codegen_flags: <defaults>
</compile_context>

<pallas_src>
import math

import jax
import jax.numpy as jnp
from jax import lax
from jax.experimental import pallas as pl
from jax.experimental.pallas import tpu as pltpu

_N_PARAMS_PER_LAYER = 18


# ---------------------------------------------------------------------------
# Fused kernel: grid = (batch_tiles, n_layers); out_ref carries the activation
# across the layer axis (its block index is constant in l).
# ---------------------------------------------------------------------------
def _fused_kernel(eeg_ref, ecg_ref,
                  w1_ref, b1_ref, w2_ref, b2_ref,          # adapter
                  wv1_ref, bv1_ref, wo1_ref, bo1_ref,      # eeg_attn (V + out proj)
                  wv2_ref, bv2_ref, wo2_ref, bo2_ref,      # ecg_attn (V + out proj)
                  wg_ref, bg_ref,                          # gate
                  we_ref, be_ref, ln_g_ref, ln_b_ref,      # enhance (Linear, GLU, LN)
                  out_ref):
    l = pl.program_id(1)

    # Layer 0: seed the VMEM-resident activation with the input eeg tile.
    @pl.when(l == 0)
    def _():
        out_ref[...] = eeg_ref[...]

    eeg = out_ref[...]            # (TB, E) current activation (carried across l)
    ecg = ecg_ref[...]            # (TB, C)
    E = eeg.shape[-1]

    # ---- adapter: Linear -> GELU(exact/erf) -> Linear ----------------------
    h = jnp.dot(ecg, w1_ref[...], preferred_element_type=jnp.float32) + b1_ref[...]
    h = 0.5 * h * (1.0 + lax.erf(h * jnp.float32(1.0 / math.sqrt(2.0))))
    ecg_proj = (jnp.dot(h, w2_ref[...], preferred_element_type=jnp.float32)
                + b2_ref[...])    # (TB, E)

    # ---- eeg_attn(query=eeg, kv=ecg_proj): single key -> softmax == 1 ------
    v1 = jnp.dot(ecg_proj, wv1_ref[...], preferred_element_type=jnp.float32) + bv1_ref[...]
    eeg_att = jnp.dot(v1, wo1_ref[...], preferred_element_type=jnp.float32) + bo1_ref[...]

    # ---- ecg_attn(query=ecg_proj, kv=eeg): single key -> softmax == 1 ------
    v2 = jnp.dot(eeg, wv2_ref[...], preferred_element_type=jnp.float32) + bv2_ref[...]
    ecg_att = jnp.dot(v2, wo2_ref[...], preferred_element_type=jnp.float32) + bo2_ref[...]

    # ---- gate = sigmoid(Linear(concat([eeg_att, ecg_att], -1))) ------------
    # Single K=2E MXU push on the lane-concatenated operand.
    combined = jnp.concatenate([eeg_att, ecg_att], axis=-1)       # (TB, 2E)
    gate = jax.nn.sigmoid(
        jnp.dot(combined, wg_ref[...], preferred_element_type=jnp.float32)
        + bg_ref[...])

    enhanced = eeg + gate * ecg_att

    # ---- enhance: Linear(E, 2E) -> GLU(dim=-1) -> LayerNorm(E) -------------
    pre = jnp.dot(enhanced, we_ref[...], preferred_element_type=jnp.float32) + be_ref[...]
    a = pre[:, :E]
    b = pre[:, E:]
    glu = a * jax.nn.sigmoid(b)

    # One-pass variance: E[x^2] - E[x]^2
    mean = jnp.mean(glu, axis=-1, keepdims=True)
    mean_sq = jnp.mean(glu * glu, axis=-1, keepdims=True)
    var = mean_sq - mean * mean
    y = (glu - mean) * lax.rsqrt(var + jnp.float32(1e-5))

    # Write back into the resident activation buffer; HBM writeback happens
    # only when the batch block changes (i.e. once per tile, after the last l).
    out_ref[...] = y * ln_g_ref[...] + ln_b_ref[...]


def _pick_tile_b(B):
    for t in (512, 256, 128, 64, 32, 16, 8):
        if B % t == 0:
            return t
    return B  # small/odd batch: single full-extent block


def ecg_guided_enhancement(eeg, ecg, layer_params):
    """eeg: (B, eeg_dim), ecg: (B, ecg_dim) -> (B, eeg_dim).

    layer_params: list of per-layer 18-tuples (see init_layer). All layers are
    fused into one pallas_call; the stack is applied sequentially with the
    output of layer l feeding layer l+1 (same ecg every layer).
    """
    B, E = eeg.shape
    _, C = ecg.shape
    n_layers = len(layer_params)
    assert n_layers >= 1
    for p in layer_params:
        assert len(p) == _N_PARAMS_PER_LAYER

    # Stack per-layer params along a leading layer axis -> (L, ...).
    stacked = [jnp.stack([p[i] for p in layer_params])
               for i in range(_N_PARAMS_PER_LAYER)]

    tile_b = _pick_tile_b(B)
    grid = (B // tile_b, n_layers)

    act_spec = pl.BlockSpec((tile_b, E), lambda b, l: (b, 0))
    ecg_spec = pl.BlockSpec((tile_b, C), lambda b, l: (b, 0))

    def _param_spec(p):
        zeros = (0,) * (p.ndim - 1)
        return pl.BlockSpec((None,) + p.shape[1:],
                            lambda b, l, _z=zeros: (l,) + _z)

    in_specs = [act_spec, ecg_spec] + [_param_spec(p) for p in stacked]

    return pl.pallas_call(
        _fused_kernel,
        out_shape=jax.ShapeDtypeStruct((B, E), jnp.float32),
        grid=grid,
        in_specs=in_specs,
        out_specs=pl.BlockSpec((tile_b, E), lambda b, l: (b, 0)),
        compiler_params=pltpu.CompilerParams(
            dimension_semantics=("parallel", "arbitrary"),
            vmem_limit_bytes=32 * 1024 * 1024),
    )(eeg, ecg, *stacked)


# ---------------------------------------------------------------------------
# Deterministic parameter init (synthetic, matches module shapes)
# ---------------------------------------------------------------------------
def init_layer(key, eeg_dim, ecg_dim, expansion_ratio):
    hidden = int(eeg_dim * expansion_ratio)
    ks = jax.random.split(key, 18)

    def w(k, shape):  # weights stored as (in, out) so the kernel does x @ W + b
        return jax.random.normal(k, shape, jnp.float32) * 0.05

    def b2d(k, n):
        return jax.random.normal(k, (1, n), jnp.float32) * 0.01

    return (
        w(ks[0], (ecg_dim, hidden)),  b2d(ks[1], hidden),            # adapter lin1
        w(ks[2], (hidden, eeg_dim)),  b2d(ks[3], eeg_dim),           # adapter lin2
        w(ks[4], (eeg_dim, eeg_dim)), b2d(ks[5], eeg_dim),           # eeg_attn V proj
        w(ks[6], (eeg_dim, eeg_dim)), b2d(ks[7], eeg_dim),           # eeg_attn out proj
        w(ks[8], (eeg_dim, eeg_dim)), b2d(ks[9], eeg_dim),           # ecg_attn V proj
        w(ks[10], (eeg_dim, eeg_dim)), b2d(ks[11], eeg_dim),         # ecg_attn out proj
        w(ks[12], (2 * eeg_dim, eeg_dim)), b2d(ks[13], eeg_dim),     # gate
        w(ks[14], (eeg_dim, 2 * eeg_dim)), b2d(ks[15], 2 * eeg_dim), # enhance lin
        1.0 + 0.01 * jax.random.normal(ks[16], (1, eeg_dim), jnp.float32),  # LN gamma
        0.01 * jax.random.normal(ks[17], (1, eeg_dim), jnp.float32),        # LN beta
    )


# ---------------------------------------------------------------------------
# Pure-JAX reference (same math) for a correctness check
# ---------------------------------------------------------------------------
def _ref_forward(eeg, ecg, layer_params):
    out = eeg
    for p in layer_params:
        (w1, b1, w2, b2, wv1, bv1, wo1, bo1, wv2, bv2, wo2, bo2,
         wg, bg, we, be, ln_g, ln_b) = p
        E = out.shape[-1]
        h = out.astype(jnp.float32)
        a = jnp.dot(ecg, w1) + b1
        a = 0.5 * a * (1.0 + lax.erf(a / jnp.sqrt(2.0)))
        ecg_proj = jnp.dot(a, w2) + b2
        eeg_att = jnp.dot(jnp.dot(ecg_proj, wv1) + bv1, wo1) + bo1
        ecg_att = jnp.dot(jnp.dot(h, wv2) + bv2, wo2) + bo2
        gate = jax.nn.sigmoid(jnp.dot(jnp.concatenate([eeg_att, ecg_att], -1), wg) + bg)
        enh = h + gate * ecg_att
        pre = jnp.dot(enh, we) + be
        glu = pre[:, :E] * jax.nn.sigmoid(pre[:, E:])
        mu = jnp.mean(glu, -1, keepdims=True)
        var = jnp.mean((glu - mu) ** 2, -1, keepdims=True)
        out = (glu - mu) / jnp.sqrt(var + 1e-5) * ln_g + ln_b
    return out


if __name__ == "__main__":
    B, EEG_DIM, ECG_DIM = 16, 64, 32
    N_LAYERS = 2
    EXPANSION = 0.25  # ECGGuidedEnhancementBlock default

    root = jax.random.PRNGKey(0)
    k_eeg, k_ecg, k_params = jax.random.split(root, 3)
    eeg = jax.random.normal(k_eeg, (B, EEG_DIM), jnp.float32)  # seq-len 1, squeezed
    ecg = jax.random.normal(k_ecg, (B, ECG_DIM), jnp.float32)

    layer_keys = jax.random.split(k_params, N_LAYERS)
    layer_params = [init_layer(k, EEG_DIM, ECG_DIM, EXPANSION) for k in layer_keys]

    out = jax.block_until_ready(ecg_guided_enhancement(eeg, ecg, layer_params))

    ref = _ref_forward(eeg, ecg, layer_params)
    assert out.shape == (B, EEG_DIM)
    assert jnp.allclose(out, ref, atol=1e-4, rtol=1e-4), "mismatch vs pure-JAX reference"

    print("KERNEL_OK")
</pallas_src>

<mosaic_0001>
module attributes {stable_mosaic.version = 11 : i64} {
  func.func @_fused_kernel(%arg0: i32, %arg1: i32, %arg2: memref<16x64xf32, #tpu.memory_space<vmem>>, %arg3: memref<16x32xf32, #tpu.memory_space<vmem>>, %arg4: memref<1x32x16xf32, #tpu.memory_space<vmem>>, %arg5: memref<1x1x16xf32, #tpu.memory_space<vmem>>, %arg6: memref<1x16x64xf32, #tpu.memory_space<vmem>>, %arg7: memref<1x1x64xf32, #tpu.memory_space<vmem>>, %arg8: memref<1x64x64xf32, #tpu.memory_space<vmem>>, %arg9: memref<1x1x64xf32, #tpu.memory_space<vmem>>, %arg10: memref<1x64x64xf32, #tpu.memory_space<vmem>>, %arg11: memref<1x1x64xf32, #tpu.memory_space<vmem>>, %arg12: memref<1x64x64xf32, #tpu.memory_space<vmem>>, %arg13: memref<1x1x64xf32, #tpu.memory_space<vmem>>, %arg14: memref<1x64x64xf32, #tpu.memory_space<vmem>>, %arg15: memref<1x1x64xf32, #tpu.memory_space<vmem>>, %arg16: memref<1x128x64xf32, #tpu.memory_space<vmem>>, %arg17: memref<1x1x64xf32, #tpu.memory_space<vmem>>, %arg18: memref<1x64x128xf32, #tpu.memory_space<vmem>>, %arg19: memref<1x1x128xf32, #tpu.memory_space<vmem>>, %arg20: memref<1x1x64xf32, #tpu.memory_space<vmem>>, %arg21: memref<1x1x64xf32, #tpu.memory_space<vmem>>, %arg22: memref<16x64xf32, #tpu.memory_space<vmem>>) attributes {dimension_semantics = [#tpu.dimension_semantics<parallel>, #tpu.dimension_semantics<arbitrary>], iteration_bounds = array<i64: 1, 2>, scalar_prefetch = 0 : i64, scratch_operands = 0 : i64, tpu.core_type = #tpu.core_type<tc>, window_params = [{transform_indices = @transform_0, window_bounds = array<i64: 16, 64>}, {transform_indices = @transform_1, window_bounds = array<i64: 16, 32>}, {transform_indices = @transform_2, window_bounds = array<i64: 1, 32, 16>}, {transform_indices = @transform_3, window_bounds = array<i64: 1, 1, 16>}, {transform_indices = @transform_4, window_bounds = array<i64: 1, 16, 64>}, {transform_indices = @transform_5, window_bounds = array<i64: 1, 1, 64>}, {transform_indices = @transform_6, window_bounds = array<i64: 1, 64, 64>}, {transform_indices = @transform_7, window_bounds = array<i64: 1, 1, 64>}, {transform_indices = @transform_8, window_bounds = array<i64: 1, 64, 64>}, {transform_indices = @transform_9, window_bounds = array<i64: 1, 1, 64>}, {transform_indices = @transform_10, window_bounds = array<i64: 1, 64, 64>}, {transform_indices = @transform_11, window_bounds = array<i64: 1, 1, 64>}, {transform_indices = @transform_12, window_bounds = array<i64: 1, 64, 64>}, {transform_indices = @transform_13, window_bounds = array<i64: 1, 1, 64>}, {transform_indices = @transform_14, window_bounds = array<i64: 1, 128, 64>}, {transform_indices = @transform_15, window_bounds = array<i64: 1, 1, 64>}, {transform_indices = @transform_16, window_bounds = array<i64: 1, 64, 128>}, {transform_indices = @transform_17, window_bounds = array<i64: 1, 1, 128>}, {transform_indices = @transform_18, window_bounds = array<i64: 1, 1, 64>}, {transform_indices = @transform_19, window_bounds = array<i64: 1, 1, 64>}, {transform_indices = @transform_20, window_bounds = array<i64: 16, 64>}]} {
    %c0_i32 = arith.constant 0 : i32
    %0 = arith.cmpi eq, %arg1, %c0_i32 : i32
    %1 = arith.extui %0 : i1 to i32
    %c0_i32_0 = arith.constant 0 : i32
    %2 = arith.cmpi ne, %1, %c0_i32_0 : i32
    scf.if %2 {
      %c0_77 = arith.constant 0 : index
      %c0_78 = arith.constant 0 : index
      %112 = vector.load %arg2[%c0_77, %c0_78] : memref<16x64xf32, #tpu.memory_space<vmem>>, vector<16x64xf32>
      %c0_79 = arith.constant 0 : index
      %c0_80 = arith.constant 0 : index
      %113 = vector.load %arg22[%c0_79, %c0_80] : memref<16x64xf32, #tpu.memory_space<vmem>>, vector<16x64xf32>
      tpu.vector_store %arg22[%c0_79, %c0_80], %112 {strides = array<i32>} : memref<16x64xf32, #tpu.memory_space<vmem>>, vector<16x64xf32>,
    } else {
    }
    %c0 = arith.constant 0 : index
    %c0_1 = arith.constant 0 : index
    %3 = vector.load %arg22[%c0, %c0_1] : memref<16x64xf32, #tpu.memory_space<vmem>>, vector<16x64xf32>
    %c0_2 = arith.constant 0 : index
    %c0_3 = arith.constant 0 : index
    %4 = vector.load %arg3[%c0_2, %c0_3] : memref<16x32xf32, #tpu.memory_space<vmem>>, vector<16x32xf32>
    %c0_4 = arith.constant 0 : index
    %c0_5 = arith.constant 0 : index
    %c0_6 = arith.constant 0 : index
    %5 = vector.load %arg4[%c0_4, %c0_5, %c0_6] : memref<1x32x16xf32, #tpu.memory_space<vmem>>, vector<1x32x16xf32>
    %6 = vector.shape_cast %5 : vector<1x32x16xf32> to vector<32x16xf32>
    %cst = arith.constant dense<0.000000e+00> : vector<16x16xf32>
    %7 = tpu.matmul %4, %6, %cst {dimension_numbers = #tpu.dot_dimension_numbers<[1], [0], [0], [1], [0, 0, 1, 1], [], []>} : vector<16x32xf32>, vector<32x16xf32>, vector<16x16xf32> -> vector<16x16xf32>
    %c0_7 = arith.constant 0 : index
    %c0_8 = arith.constant 0 : index
    %c0_9 = arith.constant 0 : index
    %8 = vector.load %arg5[%c0_7, %c0_8, %c0_9] : memref<1x1x16xf32, #tpu.memory_space<vmem>>, vector<1x1x16xf32>
    %9 = vector.shape_cast %8 : vector<1x1x16xf32> to vector<1x16xf32>
    %10 = vector.broadcast %9 : vector<1x16xf32> to vector<16x16xf32>
    %11 = arith.addf %7, %10 : vector<16x16xf32>
    %cst_10 = arith.constant 5.000000e-01 : f32
    %12 = vector.broadcast %cst_10 : f32 to vector<16x16xf32>
    %13 = arith.mulf %12, %11 : vector<16x16xf32>
    %cst_11 = arith.constant 0.707106769 : f32
    %14 = vector.broadcast %cst_11 : f32 to vector<16x16xf32>
    %15 = arith.mulf %11, %14 : vector<16x16xf32>
    %16 = math.erf %15 : vector<16x16xf32>
    %cst_12 = arith.constant 1.000000e+00 : f32
    %17 = vector.broadcast %cst_12 : f32 to vector<16x16xf32>
    %18 = arith.addf %17, %16 : vector<16x16xf32>
    %19 = arith.mulf %13, %18 : vector<16x16xf32>
    %c0_13 = arith.constant 0 : index
    %c0_14 = arith.constant 0 : index
    %c0_15 = arith.constant 0 : index
    %20 = vector.load %arg6[%c0_13, %c0_14, %c0_15] : memref<1x16x64xf32, #tpu.memory_space<vmem>>, vector<1x16x64xf32>
    %21 = vector.shape_cast %20 : vector<1x16x64xf32> to vector<16x64xf32>
    %cst_16 = arith.constant dense<0.000000e+00> : vector<16x64xf32>
    %22 = tpu.matmul %19, %21, %cst_16 {dimension_numbers = #tpu.dot_dimension_numbers<[1], [0], [0], [1], [0, 0, 1, 1], [], []>} : vector<16x16xf32>, vector<16x64xf32>, vector<16x64xf32> -> vector<16x64xf32>
    %c0_17 = arith.constant 0 : index
    %c0_18 = arith.constant 0 : index
    %c0_19 = arith.constant 0 : index
    %23 = vector.load %arg7[%c0_17, %c0_18, %c0_19] : memref<1x1x64xf32, #tpu.memory_space<vmem>>, vector<1x1x64xf32>
    %24 = vector.shape_cast %23 : vector<1x1x64xf32> to vector<1x64xf32>
    %25 = vector.broadcast %24 : vector<1x64xf32> to vector<16x64xf32>
    %26 = arith.addf %22, %25 : vector<16x64xf32>
    %c0_20 = arith.constant 0 : index
    %c0_21 = arith.constant 0 : index
    %c0_22 = arith.constant 0 : index
    %27 = vector.load %arg8[%c0_20, %c0_21, %c0_22] : memref<1x64x64xf32, #tpu.memory_space<vmem>>, vector<1x64x64xf32>
    %28 = vector.shape_cast %27 : vector<1x64x64xf32> to vector<64x64xf32>
    %cst_23 = arith.constant dense<0.000000e+00> : vector<16x64xf32>
    %29 = tpu.matmul %26, %28, %cst_23 {dimension_numbers = #tpu.dot_dimension_numbers<[1], [0], [0], [1], [0, 0, 1, 1], [], []>} : vector<16x64xf32>, vector<64x64xf32>, vector<16x64xf32> -> vector<16x64xf32>
    %c0_24 = arith.constant 0 : index
    %c0_25 = arith.constant 0 : index
    %c0_26 = arith.constant 0 : index
    %30 = vector.load %arg9[%c0_24, %c0_25, %c0_26] : memref<1x1x64xf32, #tpu.memory_space<vmem>>, vector<1x1x64xf32>
    %31 = vector.shape_cast %30 : vector<1x1x64xf32> to vector<1x64xf32>
    %32 = vector.broadcast %31 : vector<1x64xf32> to vector<16x64xf32>
    %33 = arith.addf %29, %32 : vector<16x64xf32>
    %c0_27 = arith.constant 0 : index
    %c0_28 = arith.constant 0 : index
    %c0_29 = arith.constant 0 : index
    %34 = vector.load %arg10[%c0_27, %c0_28, %c0_29] : memref<1x64x64xf32, #tpu.memory_space<vmem>>, vector<1x64x64xf32>
    %35 = vector.shape_cast %34 : vector<1x64x64xf32> to vector<64x64xf32>
    %cst_30 = arith.constant dense<0.000000e+00> : vector<16x64xf32>
    %36 = tpu.matmul %33, %35, %cst_30 {dimension_numbers = #tpu.dot_dimension_numbers<[1], [0], [0], [1], [0, 0, 1, 1], [], []>} : vector<16x64xf32>, vector<64x64xf32>, vector<16x64xf32> -> vector<16x64xf32>
    %c0_31 = arith.constant 0 : index
    %c0_32 = arith.constant 0 : index
    %c0_33 = arith.constant 0 : index
    %37 = vector.load %arg11[%c0_31, %c0_32, %c0_33] : memref<1x1x64xf32, #tpu.memory_space<vmem>>, vector<1x1x64xf32>
    %38 = vector.shape_cast %37 : vector<1x1x64xf32> to vector<1x64xf32>
    %39 = vector.broadcast %38 : vector<1x64xf32> to vector<16x64xf32>
    %40 = arith.addf %36, %39 : vector<16x64xf32>
    %c0_34 = arith.constant 0 : index
    %c0_35 = arith.constant 0 : index
    %c0_36 = arith.constant 0 : index
    %41 = vector.load %arg12[%c0_34, %c0_35, %c0_36] : memref<1x64x64xf32, #tpu.memory_space<vmem>>, vector<1x64x64xf32>
    %42 = vector.shape_cast %41 : vector<1x64x64xf32> to vector<64x64xf32>
    %cst_37 = arith.constant dense<0.000000e+00> : vector<16x64xf32>
    %43 = tpu.matmul %3, %42, %cst_37 {dimension_numbers = #tpu.dot_dimension_numbers<[1], [0], [0], [1], [0, 0, 1, 1], [], []>} : vector<16x64xf32>, vector<64x64xf32>, vector<16x64xf32> -> vector<16x64xf32>
    %c0_38 = arith.constant 0 : index
    %c0_39 = arith.constant 0 : index
    %c0_40 = arith.constant 0 : index
    %44 = vector.load %arg13[%c0_38, %c0_39, %c0_40] : memref<1x1x64xf32, #tpu.memory_space<vmem>>, vector<1x1x64xf32>
    %45 = vector.shape_cast %44 : vector<1x1x64xf32> to vector<1x64xf32>
    %46 = vector.broadcast %45 : vector<1x64xf32> to vector<16x64xf32>
    %47 = arith.addf %43, %46 : vector<16x64xf32>
    %c0_41 = arith.constant 0 : index
    %c0_42 = arith.constant 0 : index
    %c0_43 = arith.constant 0 : index
    %48 = vector.load %arg14[%c0_41, %c0_42, %c0_43] : memref<1x64x64xf32, #tpu.memory_space<vmem>>, vector<1x64x64xf32>
    %49 = vector.shape_cast %48 : vector<1x64x64xf32> to vector<64x64xf32>
    %cst_44 = arith.constant dense<0.000000e+00> : vector<16x64xf32>
    %50 = tpu.matmul %47, %49, %cst_44 {dimension_numbers = #tpu.dot_dimension_numbers<[1], [0], [0], [1], [0, 0, 1, 1], [], []>} : vector<16x64xf32>, vector<64x64xf32>, vector<16x64xf32> -> vector<16x64xf32>
    %c0_45 = arith.constant 0 : index
    %c0_46 = arith.constant 0 : index
    %c0_47 = arith.constant 0 : index
    %51 = vector.load %arg15[%c0_45, %c0_46, %c0_47] : memref<1x1x64xf32, #tpu.memory_space<vmem>>, vector<1x1x64xf32>
    %52 = vector.shape_cast %51 : vector<1x1x64xf32> to vector<1x64xf32>
    %53 = vector.broadcast %52 : vector<1x64xf32> to vector<16x64xf32>
    %54 = arith.addf %50, %53 : vector<16x64xf32>
    %55 = tpu.concatenate %40, %54 in 1 : vector<16x64xf32>, vector<16x64xf32> -> vector<16x128xf32>
    %c0_48 = arith.constant 0 : index
    %c0_49 = arith.constant 0 : index
    %c0_50 = arith.constant 0 : index
    %56 = vector.load %arg16[%c0_48, %c0_49, %c0_50] : memref<1x128x64xf32, #tpu.memory_space<vmem>>, vector<1x128x64xf32>
    %57 = vector.shape_cast %56 : vector<1x128x64xf32> to vector<128x64xf32>
    %cst_51 = arith.constant dense<0.000000e+00> : vector<16x64xf32>
    %58 = tpu.matmul %55, %57, %cst_51 {dimension_numbers = #tpu.dot_dimension_numbers<[1], [0], [0], [1], [0, 0, 1, 1], [], []>} : vector<16x128xf32>, vector<128x64xf32>, vector<16x64xf32> -> vector<16x64xf32>
    %c0_52 = arith.constant 0 : index
    %c0_53 = arith.constant 0 : index
    %c0_54 = arith.constant 0 : index
    %59 = vector.load %arg17[%c0_52, %c0_53, %c0_54] : memref<1x1x64xf32, #tpu.memory_space<vmem>>, vector<1x1x64xf32>
    %60 = vector.shape_cast %59 : vector<1x1x64xf32> to vector<1x64xf32>
    %61 = vector.broadcast %60 : vector<1x64xf32> to vector<16x64xf32>
    %62 = arith.addf %58, %61 : vector<16x64xf32>
    %63 = arith.negf %62 : vector<16x64xf32>
    %64 = math.exp %63 : vector<16x64xf32>
    %cst_55 = arith.constant 1.000000e+00 : f32
    %65 = vector.broadcast %cst_55 : f32 to vector<16x64xf32>
    %66 = arith.addf %65, %64 : vector<16x64xf32>
    %67 = arith.divf %65, %66 : vector<16x64xf32>
    %68 = arith.mulf %67, %54 : vector<16x64xf32>
    %69 = arith.addf %3, %68 : vector<16x64xf32>
    %c0_56 = arith.constant 0 : index
    %c0_57 = arith.constant 0 : index
    %c0_58 = arith.constant 0 : index
    %70 = vector.load %arg18[%c0_56, %c0_57, %c0_58] : memref<1x64x128xf32, #tpu.memory_space<vmem>>, vector<1x64x128xf32>
    %71 = vector.shape_cast %70 : vector<1x64x128xf32> to vector<64x128xf32>
    %cst_59 = arith.constant dense<0.000000e+00> : vector<16x128xf32>
    %72 = tpu.matmul %69, %71, %cst_59 {dimension_numbers = #tpu.dot_dimension_numbers<[1], [0], [0], [1], [0, 0, 1, 1], [], []>} : vector<16x64xf32>, vector<64x128xf32>, vector<16x128xf32> -> vector<16x128xf32>
    %c0_60 = arith.constant 0 : index
    %c0_61 = arith.constant 0 : index
    %c0_62 = arith.constant 0 : index
    %73 = vector.load %arg19[%c0_60, %c0_61, %c0_62] : memref<1x1x128xf32, #tpu.memory_space<vmem>>, vector<1x1x128xf32>
    %74 = vector.shape_cast %73 : vector<1x1x128xf32> to vector<1x128xf32>
    %75 = vector.broadcast %74 : vector<1x128xf32> to vector<16x128xf32>
    %76 = arith.addf %72, %75 : vector<16x128xf32>
    %77 = vector.extract_strided_slice %76 {offsets = [0, 0], sizes = [16, 64], strides = [1, 1]} : vector<16x128xf32> to vector<16x64xf32>
    %78 = vector.extract_strided_slice %76 {offsets = [0, 64], sizes = [16, 64], strides = [1, 1]} : vector<16x128xf32> to vector<16x64xf32>
    %79 = arith.negf %78 : vector<16x64xf32>
    %80 = math.exp %79 : vector<16x64xf32>
    %cst_63 = arith.constant 1.000000e+00 : f32
    %81 = vector.broadcast %cst_63 : f32 to vector<16x64xf32>
    %82 = arith.addf %81, %80 : vector<16x64xf32>
    %83 = arith.divf %81, %82 : vector<16x64xf32>
    %84 = arith.mulf %77, %83 : vector<16x64xf32>
    %cst_64 = arith.constant dense<0.000000e+00> : vector<16xf32>
    %85 = vector.multi_reduction <add>, %84, %cst_64 [1] : vector<16x64xf32> to vector<16xf32>
    %86 = vector.shape_cast %85 : vector<16xf32> to vector<16x1xf32>
    %cst_65 = arith.constant 6.400000e+01 : f32
    %87 = vector.broadcast %cst_65 : f32 to vector<16x1xf32>
    %88 = arith.divf %86, %87 : vector<16x1xf32>
    %89 = arith.mulf %84, %84 : vector<16x64xf32>
    %cst_66 = arith.constant dense<0.000000e+00> : vector<16xf32>
    %90 = vector.multi_reduction <add>, %89, %cst_66 [1] : vector<16x64xf32> to vector<16xf32>
    %91 = vector.shape_cast %90 : vector<16xf32> to vector<16x1xf32>
    %cst_67 = arith.constant 6.400000e+01 : f32
    %92 = vector.broadcast %cst_67 : f32 to vector<16x1xf32>
    %93 = arith.divf %91, %92 : vector<16x1xf32>
    %94 = arith.mulf %88, %88 : vector<16x1xf32>
    %95 = arith.subf %93, %94 : vector<16x1xf32>
    %96 = vector.broadcast %88 : vector<16x1xf32> to vector<16x64xf32>
    %97 = arith.subf %84, %96 : vector<16x64xf32>
    %cst_68 = arith.constant 9.99999974E-6 : f32
    %98 = vector.broadcast %cst_68 : f32 to vector<16x1xf32>
    %99 = arith.addf %95, %98 : vector<16x1xf32>
    %100 = math.rsqrt %99 : vector<16x1xf32>
    %101 = vector.broadcast %100 : vector<16x1xf32> to vector<16x64xf32>
    %102 = arith.mulf %97, %101 : vector<16x64xf32>
    %c0_69 = arith.constant 0 : index
    %c0_70 = arith.constant 0 : index
    %c0_71 = arith.constant 0 : index
    %103 = vector.load %arg20[%c0_69, %c0_70, %c0_71] : memref<1x1x64xf32, #tpu.memory_space<vmem>>, vector<1x1x64xf32>
    %104 = vector.shape_cast %103 : vector<1x1x64xf32> to vector<1x64xf32>
    %105 = vector.broadcast %104 : vector<1x64xf32> to vector<16x64xf32>
    %106 = arith.mulf %102, %105 : vector<16x64xf32>
    %c0_72 = arith.constant 0 : index
    %c0_73 = arith.constant 0 : index
    %c0_74 = arith.constant 0 : index
    %107 = vector.load %arg21[%c0_72, %c0_73, %c0_74] : memref<1x1x64xf32, #tpu.memory_space<vmem>>, vector<1x1x64xf32>
    %108 = vector.shape_cast %107 : vector<1x1x64xf32> to vector<1x64xf32>
    %109 = vector.broadcast %108 : vector<1x64xf32> to vector<16x64xf32>
    %110 = arith.addf %106, %109 : vector<16x64xf32>
    %c0_75 = arith.constant 0 : index
    %c0_76 = arith.constant 0 : index
    %111 = vector.load %arg22[%c0_75, %c0_76] : memref<16x64xf32, #tpu.memory_space<vmem>>, vector<16x64xf32>
    tpu.vector_store %arg22[%c0_75, %c0_76], %110 {strides = array<i32>} : memref<16x64xf32, #tpu.memory_space<vmem>>, vector<16x64xf32>,
    return
  }
  func.func @transform_0(%arg0: i32, %arg1: i32) -> (i32, i32) {
    %c0_i32 = arith.constant 0 : i32
    %c0_i32_0 = arith.constant 0 : i32
    return %arg0, %c0_i32 : i32, i32
  }
  func.func @transform_1(%arg0: i32, %arg1: i32) -> (i32, i32) {
    %c0_i32 = arith.constant 0 : i32
    %c0_i32_0 = arith.constant 0 : i32
    return %arg0, %c0_i32 : i32, i32
  }
  func.func @transform_2(%arg0: i32, %arg1: i32) -> (i32, i32, i32) {
    %c0_i32 = arith.constant 0 : i32
    %c0_i32_0 = arith.constant 0 : i32
    %c0_i32_1 = arith.constant 0 : i32
    return %arg1, %c0_i32, %c0_i32_0 : i32, i32, i32
  }
  func.func @transform_3(%arg0: i32, %arg1: i32) -> (i32, i32, i32) {
    %c0_i32 = arith.constant 0 : i32
    %c0_i32_0 = arith.constant 0 : i32
    %c0_i32_1 = arith.constant 0 : i32
    return %arg1, %c0_i32, %c0_i32_0 : i32, i32, i32
  }
  func.func @transform_4(%arg0: i32, %arg1: i32) -> (i32, i32, i32) {
    %c0_i32 = arith.constant 0 : i32
    %c0_i32_0 = arith.constant 0 : i32
    %c0_i32_1 = arith.constant 0 : i32
    return %arg1, %c0_i32, %c0_i32_0 : i32, i32, i32
  }
  func.func @transform_5(%arg0: i32, %arg1: i32) -> (i32, i32, i32) {
    %c0_i32 = arith.constant 0 : i32
    %c0_i32_0 = arith.constant 0 : i32
    %c0_i32_1 = arith.constant 0 : i32
    return %arg1, %c0_i32, %c0_i32_0 : i32, i32, i32
  }
  func.func @transform_6(%arg0: i32, %arg1: i32) -> (i32, i32, i32) {
    %c0_i32 = arith.constant 0 : i32
    %c0_i32_0 = arith.constant 0 : i32
    %c0_i32_1 = arith.constant 0 : i32
    return %arg1, %c0_i32, %c0_i32_0 : i32, i32, i32
  }
  func.func @transform_7(%arg0: i32, %arg1: i32) -> (i32, i32, i32) {
    %c0_i32 = arith.constant 0 : i32
    %c0_i32_0 = arith.constant 0 : i32
    %c0_i32_1 = arith.constant 0 : i32
    return %arg1, %c0_i32, %c0_i32_0 : i32, i32, i32
  }
  func.func @transform_8(%arg0: i32, %arg1: i32) -> (i32, i32, i32) {
    %c0_i32 = arith.constant 0 : i32
    %c0_i32_0 = arith.constant 0 : i32
    %c0_i32_1 = arith.constant 0 : i32
    return %arg1, %c0_i32, %c0_i32_0 : i32, i32, i32
  }
  func.func @transform_9(%arg0: i32, %arg1: i32) -> (i32, i32, i32) {
    %c0_i32 = arith.constant 0 : i32
    %c0_i32_0 = arith.constant 0 : i32
    %c0_i32_1 = arith.constant 0 : i32
    return %arg1, %c0_i32, %c0_i32_0 : i32, i32, i32
  }
  func.func @transform_10(%arg0: i32, %arg1: i32) -> (i32, i32, i32) {
    %c0_i32 = arith.constant 0 : i32
    %c0_i32_0 = arith.constant 0 : i32
    %c0_i32_1 = arith.constant 0 : i32
    return %arg1, %c0_i32, %c0_i32_0 : i32, i32, i32
  }
  func.func @transform_11(%arg0: i32, %arg1: i32) -> (i32, i32, i32) {
    %c0_i32 = arith.constant 0 : i32
    %c0_i32_0 = arith.constant 0 : i32
    %c0_i32_1 = arith.constant 0 : i32
    return %arg1, %c0_i32, %c0_i32_0 : i32, i32, i32
  }
  func.func @transform_12(%arg0: i32, %arg1: i32) -> (i32, i32, i32) {
    %c0_i32 = arith.constant 0 : i32
    %c0_i32_0 = arith.constant 0 : i32
    %c0_i32_1 = arith.constant 0 : i32
    return %arg1, %c0_i32, %c0_i32_0 : i32, i32, i32
  }
  func.func @transform_13(%arg0: i32, %arg1: i32) -> (i32, i32, i32) {
    %c0_i32 = arith.constant 0 : i32
    %c0_i32_0 = arith.constant 0 : i32
    %c0_i32_1 = arith.constant 0 : i32
    return %arg1, %c0_i32, %c0_i32_0 : i32, i32, i32
  }
  func.func @transform_14(%arg0: i32, %arg1: i32) -> (i32, i32, i32) {
    %c0_i32 = arith.constant 0 : i32
    %c0_i32_0 = arith.constant 0 : i32
    %c0_i32_1 = arith.constant 0 : i32
    return %arg1, %c0_i32, %c0_i32_0 : i32, i32, i32
  }
  func.func @transform_15(%arg0: i32, %arg1: i32) -> (i32, i32, i32) {
    %c0_i32 = arith.constant 0 : i32
    %c0_i32_0 = arith.constant 0 : i32
    %c0_i32_1 = arith.constant 0 : i32
    return %arg1, %c0_i32, %c0_i32_0 : i32, i32, i32
  }
  func.func @transform_16(%arg0: i32, %arg1: i32) -> (i32, i32, i32) {
    %c0_i32 = arith.constant 0 : i32
    %c0_i32_0 = arith.constant 0 : i32
    %c0_i32_1 = arith.constant 0 : i32
    return %arg1, %c0_i32, %c0_i32_0 : i32, i32, i32
  }
  func.func @transform_17(%arg0: i32, %arg1: i32) -> (i32, i32, i32) {
    %c0_i32 = arith.constant 0 : i32
    %c0_i32_0 = arith.constant 0 : i32
    %c0_i32_1 = arith.constant 0 : i32
    return %arg1, %c0_i32, %c0_i32_0 : i32, i32, i32
  }
  func.func @transform_18(%arg0: i32, %arg1: i32) -> (i32, i32, i32) {
    %c0_i32 = arith.constant 0 : i32
    %c0_i32_0 = arith.constant 0 : i32
    %c0_i32_1 = arith.constant 0 : i32
    return %arg1, %c0_i32, %c0_i32_0 : i32, i32, i32
  }
  func.func @transform_19(%arg0: i32, %arg1: i32) -> (i32, i32, i32) {
    %c0_i32 = arith.constant 0 : i32
    %c0_i32_0 = arith.constant 0 : i32
    %c0_i32_1 = arith.constant 0 : i32
    return %arg1, %c0_i32, %c0_i32_0 : i32, i32, i32
  }
  func.func @transform_20(%arg0: i32, %arg1: i32) -> (i32, i32) {
    %c0_i32 = arith.constant 0 : i32
    %c0_i32_0 = arith.constant 0 : i32
    return %arg0, %c0_i32 : i32, i32
  }
}

</mosaic_0001>

<llo_original>
// kernel: tpu_custom_call.1
$region0: #{tpu_custom_call.1}
  #allocation0 [shape = 'u32[]', space=smem, size = 0x4, offset = 0x4, fixed_abs, tag = 'smem constant byte address 0x4 - core index']
  #allocation1 [shape = 'u32[72,128]{1,0:T(1,128)}', space=vmem, size = 0x9000, scoped, tag = 'internal scratch']
  %s0 = inlined_call_operand.vmem [shape: f32[16,64], index: 0, kind: input, shape index: {}]
  %s1 = inlined_call_operand.vmem [shape: f32[16,32], index: 1, kind: input, shape index: {}]
  %s2 = inlined_call_operand.vmem [shape: f32[2,32,16], index: 2, kind: input, shape index: {}]
  %s3 = inlined_call_operand.vmem [shape: f32[2,1,16], index: 3, kind: input, shape index: {}]
  %s4 = inlined_call_operand.vmem [shape: f32[2,16,64], index: 4, kind: input, shape index: {}]
  %s5 = inlined_call_operand.vmem [shape: f32[2,1,64], index: 5, kind: input, shape index: {}]
  %s6 = inlined_call_operand.vmem [shape: f32[2,64,64], index: 6, kind: input, shape index: {}]
  %s7 = inlined_call_operand.vmem [shape: f32[2,1,64], index: 7, kind: input, shape index: {}]
  %s8 = inlined_call_operand.vmem [shape: f32[2,64,64], index: 8, kind: input, shape index: {}]
  %s9 = inlined_call_operand.vmem [shape: f32[2,1,64], index: 9, kind: input, shape index: {}]
  %s10 = inlined_call_operand.vmem [shape: f32[2,64,64], index: 10, kind: input, shape index: {}]
  %s11 = inlined_call_operand.vmem [shape: f32[2,1,64], index: 11, kind: input, shape index: {}]
  %s12 = inlined_call_operand.hbm [shape: f32[2,64,64], index: 12, kind: input, shape index: {}]
  %s13 = inlined_call_operand.vmem [shape: f32[2,1,64], index: 13, kind: input, shape index: {}]
  %s14 = inlined_call_operand.vmem [shape: f32[2,128,64], index: 14, kind: input, shape index: {}]
  %s15 = inlined_call_operand.vmem [shape: f32[2,1,64], index: 15, kind: input, shape index: {}]
  %s16 = inlined_call_operand.hbm [shape: f32[2,64,128], index: 16, kind: input, shape index: {}]
  %s17 = inlined_call_operand.vmem [shape: f32[2,1,128], index: 17, kind: input, shape index: {}]
  %s18 = inlined_call_operand.vmem [shape: f32[2,1,64], index: 18, kind: input, shape index: {}]
  %s19 = inlined_call_operand.vmem [shape: f32[2,1,64], index: 19, kind: input, shape index: {}]
  %s20 = inlined_call_operand.hbm [shape: f32[16,64], index: 20, kind: output, shape index: {}]
  %s21 = sld [smem:[#allocation0]]
  $region125: #{tpu_custom_call.1} parent=0
    _
  %s23 = ssub.s32 1, %s21
  %s24 = scalar_select 0, %s23, %s21
  $region1: #{tpu_custom_call.1} parent=0
    #allocation2 [shape = 'u8[65536]{0}', space=vmem, size = 0x10000, scoped, tag = 'input window, operand 12']
    #allocation3 [shape = 's32[2]{0}', space=sflag, size = 0x8, scoped, tag = 'scoped memory for tpu_custom_call.1']
    #allocation4 [shape = 's32[2]{0}', space=sflag, size = 0x8, scoped, tag = 'scoped memory for tpu_custom_call.1']
    #allocation5 [shape = 'u8[65536]{0}', space=vmem, size = 0x10000, scoped, tag = 'input window, operand 16']
    #allocation6 [shape = 's32[2]{0}', space=sflag, size = 0x8, scoped, tag = 'scoped memory for tpu_custom_call.1']
    #allocation7 [shape = 'u8[8192]{0}', space=vmem, size = 0x2000, scoped, tag = 'output window, operand 0, single buffered']
    %25 = vsyncpa [#allocation3], 0
    %s26 = scalar_lea.sflag [#allocation3], 1
    %27 = vsyncpa %s26, 0
    %28 = vsyncpa [#allocation6], 0
    %s29 = scalar_lea.sflag [#allocation6], 1
    %30 = vsyncpa %s29, 0
    %31 = vsyncpa [#allocation4], 0
    loop: start=0, step=1, limit=4
    $region2: #{tpu_custom_call.1} parent=1 // loop_pre_header
      _
    $region3: #{tpu_custom_call.1} parent=1 // loop_header
      %s33 = sphi 0, %s37
      %p34 = scmp.ge.s32.totalorder %s33, 4
      %s40 = sphi 0, %s52
      %s41 = sphi 0, %s48
      %s42 = sphi 0, %s40
      %s43 = sphi 0, %s41
      %s44 = sphi 0, %s42
      %s45 = sphi 0, %s43
      %s55 = sphi 0, %s57
      %s58 = sphi 0, %s55
      %s59 = sphi 0, %s58
      %s75 = sphi 0, %s59
      %s81 = sphi 0, %s83
      %s84 = sphi 0, %s81
      %s85 = sphi 0, %s84
      %s101 = sphi 0, %s85
      %s107 = sphi 0, %s109
      %s110 = sphi 0, %s107
      %s111 = sphi 0, %s110
      %s127 = sphi 0, %s111
      %s133 = sphi 0, %s135
      %s136 = sphi 0, %s133
      %s137 = sphi 0, %s136
      %s153 = sphi 0, %s137
      %s159 = sphi 0, %s161
      %s162 = sphi 0, %s159
      %s163 = sphi 0, %s162
      %s179 = sphi 0, %s163
      %s185 = sphi 0, %s187
      %s188 = sphi 0, %s185
      %s189 = sphi 0, %s188
      %s205 = sphi 0, %s189
      %s211 = sphi 0, %s213
      %s214 = sphi 0, %s211
      %s215 = sphi 0, %s214
      %s231 = sphi 0, %s215
      %s237 = sphi 0, %s239
      %s240 = sphi 0, %s237
      %s241 = sphi 0, %s240
      %s257 = sphi 0, %s241
      %s263 = sphi 0, %s265
      %s266 = sphi 0, %s263
      %s267 = sphi 0, %s266
      %s283 = sphi 0, %s267
      %s289 = sphi 0, %s291
      %s292 = sphi 0, %s289
      %s293 = sphi 0, %s292
      %s309 = sphi 0, %s293
      %s315 = sphi 0, %s317
      %s318 = sphi 0, %s315
      %s319 = sphi 0, %s318
      %s335 = sphi 0, %s319
      %s341 = sphi 0, %s343
      %s344 = sphi 0, %s341
      %s345 = sphi 0, %s344
      %s361 = sphi 0, %s345
      %s367 = sphi 0, %s369
      %s370 = sphi 0, %s367
      %s371 = sphi 0, %s370
      %s387 = sphi 0, %s371
      %s393 = sphi 0, %s395
      %s396 = sphi 0, %s393
      %s397 = sphi 0, %s396
      %s413 = sphi 0, %s397
      %s419 = sphi 0, %s421
      %s422 = sphi 0, %s419
      %s423 = sphi 0, %s422
      %s439 = sphi 0, %s423
      %s445 = sphi 0, %s447
      %s448 = sphi 0, %s445
      %s449 = sphi 0, %s448
      %s465 = sphi 0, %s449
      %s471 = sphi 0, %s473
      %s474 = sphi 0, %s471
      %s475 = sphi 0, %s474
      %s491 = sphi 0, %s475
      %s497 = sphi 0, %s499
      %s500 = sphi 0, %s497
      %s501 = sphi 0, %s500
      %s517 = sphi 0, %s501
      %s523 = sphi 0, %s525
      %s526 = sphi 0, %s523
      %s527 = sphi 0, %s526
      %s543 = sphi 0, %s527
      %s549 = sphi 0, %s551
      %s552 = sphi 0, %s549
      %s553 = sphi 0, %s552
      %s569 = sphi 0, %s553
      %s575 = sphi 0, %s577
      %s578 = sphi 0, %s575
      %s579 = sphi 0, %s578
      %s595 = sphi 0, %s579
    $region4: #{tpu_custom_call.1} parent=1 // loop_header_branch
      %36 = sbr.rel (%p34) target = $region8
    $region5: #{tpu_custom_call.1} parent=1 // loop_body
      %s38 = ssub.s32 %s33, 1
      %s39 = ssub.s32 %s33, 2
      %s46 = sadd.s32 1, %s41
      %p47 = scmp.ge.s32.totalorder %s46, 2
      %s48 = scalar_select %p47, 0, %s46
      %s49 = sadd.s32 1, %s40
      %s50 = scalar_select %p47, %s49, %s40
      %p51 = scmp.ge.s32.totalorder %s50, 1
      %s52 = scalar_select %p51, 0, %s50
      %s53 = ssub.s32 %s40, %s52
      %p54 = scmp.eq.s32.totalorder %s53, 0
      %s56 = sadd.s32 %s55, 1
      %s57 = scalar_select %p54, %s55, %s56
      %p60 = pneg %p54
      %p61 = scmp.eq.s32.totalorder %s33, 1
      %p62 = por %p60, %p61
      %p63 = scmp.ne.s32.totalorder %s55, %s58
      %p64 = scmp.eq.s32.totalorder %s33, 0
      %p65 = por %p63, %p64
      %p66 = scmp.ne.s32.totalorder %s55, %s58
      %p67 = scmp.eq.s32.totalorder %s38, 1
      %p68 = por %p66, %p67
      %p69 = scmp.ne.s32.totalorder %s58, %s59
      %p70 = scmp.eq.s32.totalorder %s38, 0
      %p71 = por %p69, %p70
      %p72 = scmp.ne.s32.totalorder %s58, %s59
      %p73 = scmp.eq.s32.totalorder %s39, 1
      %p74 = por %p72, %p73
      %p76 = scmp.ne.s32.totalorder %s59, %s75
      %p77 = scmp.eq.s32.totalorder %s39, 0
      %p78 = por %p76, %p77
      %s79 = ssub.s32 %s40, %s52
      %p80 = scmp.eq.s32.totalorder %s79, 0
      %s82 = sadd.s32 %s81, 1
      %s83 = scalar_select %p80, %s81, %s82
      %p86 = pneg %p80
      %p87 = scmp.eq.s32.totalorder %s33, 1
      %p88 = por %p86, %p87
      %p89 = scmp.ne.s32.totalorder %s81, %s84
      %p90 = scmp.eq.s32.totalorder %s33, 0
      %p91 = por %p89, %p90
      %p92 = scmp.ne.s32.totalorder %s81, %s84
      %p93 = scmp.eq.s32.totalorder %s38, 1
      %p94 = por %p92, %p93
      %p95 = scmp.ne.s32.totalorder %s84, %s85
      %p96 = scmp.eq.s32.totalorder %s38, 0
      %p97 = por %p95, %p96
      %p98 = scmp.ne.s32.totalorder %s84, %s85
      %p99 = scmp.eq.s32.totalorder %s39, 1
      %p100 = por %p98, %p99
      %p102 = scmp.ne.s32.totalorder %s85, %s101
      %p103 = scmp.eq.s32.totalorder %s39, 0
      %p104 = por %p102, %p103
      %s105 = ssub.s32 %s41, %s48
      %p106 = scmp.eq.s32.totalorder %s105, 0
      %s108 = sadd.s32 %s107, 1
      %s109 = scalar_select %p106, %s107, %s108
      %p112 = pneg %p106
      %p113 = scmp.eq.s32.totalorder %s33, 1
      %p114 = por %p112, %p113
      %p115 = scmp.ne.s32.totalorder %s107, %s110
      %p116 = scmp.eq.s32.totalorder %s33, 0
      %p117 = por %p115, %p116
      %p118 = scmp.ne.s32.totalorder %s107, %s110
      %p119 = scmp.eq.s32.totalorder %s38, 1
      %p120 = por %p118, %p119
      %p121 = scmp.ne.s32.totalorder %s110, %s111
      %p122 = scmp.eq.s32.totalorder %s38, 0
      %p123 = por %p121, %p122
      %p124 = scmp.ne.s32.totalorder %s110, %s111
      %p125 = scmp.eq.s32.totalorder %s39, 1
      %p126 = por %p124, %p125
      %p128 = scmp.ne.s32.totalorder %s111, %s127
      %p129 = scmp.eq.s32.totalorder %s39, 0
      %p130 = por %p128, %p129
      %s131 = ssub.s32 %s41, %s48
      %p132 = scmp.eq.s32.totalorder %s131, 0
      %s134 = sadd.s32 %s133, 1
      %s135 = scalar_select %p132, %s133, %s134
      %p138 = pneg %p132
      %p139 = scmp.eq.s32.totalorder %s33, 1
      %p140 = por %p138, %p139
      %p141 = scmp.ne.s32.totalorder %s133, %s136
      %p142 = scmp.eq.s32.totalorder %s33, 0
      %p143 = por %p141, %p142
      %p144 = scmp.ne.s32.totalorder %s133, %s136
      %p145 = scmp.eq.s32.totalorder %s38, 1
      %p146 = por %p144, %p145
      %p147 = scmp.ne.s32.totalorder %s136, %s137
      %p148 = scmp.eq.s32.totalorder %s38, 0
      %p149 = por %p147, %p148
      %p150 = scmp.ne.s32.totalorder %s136, %s137
      %p151 = scmp.eq.s32.totalorder %s39, 1
      %p152 = por %p150, %p151
      %p154 = scmp.ne.s32.totalorder %s137, %s153
      %p155 = scmp.eq.s32.totalorder %s39, 0
      %p156 = por %p154, %p155
      %s157 = ssub.s32 %s41, %s48
      %p158 = scmp.eq.s32.totalorder %s157, 0
      %s160 = sadd.s32 %s159, 1
      %s161 = scalar_select %p158, %s159, %s160
      %p164 = pneg %p158
      %p165 = scmp.eq.s32.totalorder %s33, 1
      %p166 = por %p164, %p165
      %p167 = scmp.ne.s32.totalorder %s159, %s162
      %p168 = scmp.eq.s32.totalorder %s33, 0
      %p169 = por %p167, %p168
      %p170 = scmp.ne.s32.totalorder %s159, %s162
      %p171 = scmp.eq.s32.totalorder %s38, 1
      %p172 = por %p170, %p171
      %p173 = scmp.ne.s32.totalorder %s162, %s163
      %p174 = scmp.eq.s32.totalorder %s38, 0
      %p175 = por %p173, %p174
      %p176 = scmp.ne.s32.totalorder %s162, %s163
      %p177 = scmp.eq.s32.totalorder %s39, 1
      %p178 = por %p176, %p177
      %p180 = scmp.ne.s32.totalorder %s163, %s179
      %p181 = scmp.eq.s32.totalorder %s39, 0
      %p182 = por %p180, %p181
      %s183 = ssub.s32 %s41, %s48
      %p184 = scmp.eq.s32.totalorder %s183, 0
      %s186 = sadd.s32 %s185, 1
      %s187 = scalar_select %p184, %s185, %s186
      %p190 = pneg %p184
      %p191 = scmp.eq.s32.totalorder %s33, 1
      %p192 = por %p190, %p191
      %p193 = scmp.ne.s32.totalorder %s185, %s188
      %p194 = scmp.eq.s32.totalorder %s33, 0
      %p195 = por %p193, %p194
      %p196 = scmp.ne.s32.totalorder %s185, %s188
      %p197 = scmp.eq.s32.totalorder %s38, 1
      %p198 = por %p196, %p197
      %p199 = scmp.ne.s32.totalorder %s188, %s189
      %p200 = scmp.eq.s32.totalorder %s38, 0
      %p201 = por %p199, %p200
      %p202 = scmp.ne.s32.totalorder %s188, %s189
      %p203 = scmp.eq.s32.totalorder %s39, 1
      %p204 = por %p202, %p203
      %p206 = scmp.ne.s32.totalorder %s189, %s205
      %p207 = scmp.eq.s32.totalorder %s39, 0
      %p208 = por %p206, %p207
      %s209 = ssub.s32 %s41, %s48
      %p210 = scmp.eq.s32.totalorder %s209, 0
      %s212 = sadd.s32 %s211, 1
      %s213 = scalar_select %p210, %s211, %s212
      %p216 = pneg %p210
      %p217 = scmp.eq.s32.totalorder %s33, 1
      %p218 = por %p216, %p217
      %p219 = scmp.ne.s32.totalorder %s211, %s214
      %p220 = scmp.eq.s32.totalorder %s33, 0
      %p221 = por %p219, %p220
      %p222 = scmp.ne.s32.totalorder %s211, %s214
      %p223 = scmp.eq.s32.totalorder %s38, 1
      %p224 = por %p222, %p223
      %p225 = scmp.ne.s32.totalorder %s214, %s215
      %p226 = scmp.eq.s32.totalorder %s38, 0
      %p227 = por %p225, %p226
      %p228 = scmp.ne.s32.totalorder %s214, %s215
      %p229 = scmp.eq.s32.totalorder %s39, 1
      %p230 = por %p228, %p229
      %p232 = scmp.ne.s32.totalorder %s215, %s231
      %p233 = scmp.eq.s32.totalorder %s39, 0
      %p234 = por %p232, %p233
      %s235 = ssub.s32 %s41, %s48
      %p236 = scmp.eq.s32.totalorder %s235, 0
      %s238 = sadd.s32 %s237, 1
      %s239 = scalar_select %p236, %s237, %s238
      %p242 = pneg %p236
      %p243 = scmp.eq.s32.totalorder %s33, 1
      %p244 = por %p242, %p243
      %p245 = scmp.ne.s32.totalorder %s237, %s240
      %p246 = scmp.eq.s32.totalorder %s33, 0
      %p247 = por %p245, %p246
      %p248 = scmp.ne.s32.totalorder %s237, %s240
      %p249 = scmp.eq.s32.totalorder %s38, 1
      %p250 = por %p248, %p249
      %p251 = scmp.ne.s32.totalorder %s240, %s241
      %p252 = scmp.eq.s32.totalorder %s38, 0
      %p253 = por %p251, %p252
      %p254 = scmp.ne.s32.totalorder %s240, %s241
      %p255 = scmp.eq.s32.totalorder %s39, 1
      %p256 = por %p254, %p255
      %p258 = scmp.ne.s32.totalorder %s241, %s257
      %p259 = scmp.eq.s32.totalorder %s39, 0
      %p260 = por %p258, %p259
      %s261 = ssub.s32 %s41, %s48
      %p262 = scmp.eq.s32.totalorder %s261, 0
      %s264 = sadd.s32 %s263, 1
      %s265 = scalar_select %p262, %s263, %s264
      %p268 = pneg %p262
      %p269 = scmp.eq.s32.totalorder %s33, 1
      %p270 = por %p268, %p269
      %p271 = scmp.ne.s32.totalorder %s263, %s266
      %p272 = scmp.eq.s32.totalorder %s33, 0
      %p273 = por %p271, %p272
      %p274 = scmp.ne.s32.totalorder %s263, %s266
      %p275 = scmp.eq.s32.totalorder %s38, 1
      %p276 = por %p274, %p275
      %p277 = scmp.ne.s32.totalorder %s266, %s267
      %p278 = scmp.eq.s32.totalorder %s38, 0
      %p279 = por %p277, %p278
      %p280 = scmp.ne.s32.totalorder %s266, %s267
      %p281 = scmp.eq.s32.totalorder %s39, 1
      %p282 = por %p280, %p281
      %p284 = scmp.ne.s32.totalorder %s267, %s283
      %p285 = scmp.eq.s32.totalorder %s39, 0
      %p286 = por %p284, %p285
      %s287 = ssub.s32 %s41, %s48
      %p288 = scmp.eq.s32.totalorder %s287, 0
      %s290 = sadd.s32 %s289, 1
      %s291 = scalar_select %p288, %s289, %s290
      %p294 = pneg %p288
      %p295 = scmp.eq.s32.totalorder %s33, 1
      %p296 = por %p294, %p295
      %p297 = scmp.ne.s32.totalorder %s289, %s292
      %p298 = scmp.eq.s32.totalorder %s33, 0
      %p299 = por %p297, %p298
      %p300 = scmp.ne.s32.totalorder %s289, %s292
      %p301 = scmp.eq.s32.totalorder %s38, 1
      %p302 = por %p300, %p301
      %p303 = scmp.ne.s32.totalorder %s292, %s293
      %p304 = scmp.eq.s32.totalorder %s38, 0
      %p305 = por %p303, %p304
      %p306 = scmp.ne.s32.totalorder %s292, %s293
      %p307 = scmp.eq.s32.totalorder %s39, 1
      %p308 = por %p306, %p307
      %p310 = scmp.ne.s32.totalorder %s293, %s309
      %p311 = scmp.eq.s32.totalorder %s39, 0
      %p312 = por %p310, %p311
      %s313 = ssub.s32 %s41, %s48
      %p314 = scmp.eq.s32.totalorder %s313, 0
      %s316 = sadd.s32 %s315, 1
      %s317 = scalar_select %p314, %s315, %s316
      %p320 = pneg %p314
      %p321 = scmp.eq.s32.totalorder %s33, 1
      %p322 = por %p320, %p321
      %p323 = scmp.ne.s32.totalorder %s315, %s318
      %p324 = scmp.eq.s32.totalorder %s33, 0
      %p325 = por %p323, %p324
      %p326 = scmp.ne.s32.totalorder %s315, %s318
      %p327 = scmp.eq.s32.totalorder %s38, 1
      %p328 = por %p326, %p327
      %p329 = scmp.ne.s32.totalorder %s318, %s319
      %p330 = scmp.eq.s32.totalorder %s38, 0
      %p331 = por %p329, %p330
      %p332 = scmp.ne.s32.totalorder %s318, %s319
      %p333 = scmp.eq.s32.totalorder %s39, 1
      %p334 = por %p332, %p333
      %p336 = scmp.ne.s32.totalorder %s319, %s335
      %p337 = scmp.eq.s32.totalorder %s39, 0
      %p338 = por %p336, %p337
      %s339 = ssub.s32 %s41, %s48
      %p340 = scmp.eq.s32.totalorder %s339, 0
      %s342 = sadd.s32 %s341, 1
      %s343 = scalar_select %p340, %s341, %s342
      %p346 = pneg %p340
      %p347 = scmp.eq.s32.totalorder %s33, 1
      %p348 = por %p346, %p347
      %p349 = scmp.ne.s32.totalorder %s341, %s344
      %p350 = scmp.eq.s32.totalorder %s33, 0
      %p351 = por %p349, %p350
      %p352 = scmp.ne.s32.totalorder %s341, %s344
      %p353 = scmp.eq.s32.totalorder %s38, 1
      %p354 = por %p352, %p353
      %p355 = scmp.ne.s32.totalorder %s344, %s345
      %p356 = scmp.eq.s32.totalorder %s38, 0
      %p357 = por %p355, %p356
      %p358 = scmp.ne.s32.totalorder %s344, %s345
      %p359 = scmp.eq.s32.totalorder %s39, 1
      %p360 = por %p358, %p359
      %p362 = scmp.ne.s32.totalorder %s345, %s361
      %p363 = scmp.eq.s32.totalorder %s39, 0
      %p364 = por %p362, %p363
      %s365 = ssub.s32 %s41, %s48
      %p366 = scmp.eq.s32.totalorder %s365, 0
      %s368 = sadd.s32 %s367, 1
      %s369 = scalar_select %p366, %s367, %s368
      %p372 = pneg %p366
      %p373 = scmp.eq.s32.totalorder %s33, 1
      %p374 = por %p372, %p373
      %p375 = scmp.ne.s32.totalorder %s367, %s370
      %p376 = scmp.eq.s32.totalorder %s33, 0
      %p377 = por %p375, %p376
      %p378 = scmp.ne.s32.totalorder %s367, %s370
      %p379 = scmp.eq.s32.totalorder %s38, 1
      %p380 = por %p378, %p379
      %p381 = scmp.ne.s32.totalorder %s370, %s371
      %p382 = scmp.eq.s32.totalorder %s38, 0
      %p383 = por %p381, %p382
      %p384 = scmp.ne.s32.totalorder %s370, %s371
      %p385 = scmp.eq.s32.totalorder %s39, 1
      %p386 = por %p384, %p385
      %p388 = scmp.ne.s32.totalorder %s371, %s387
      %p389 = scmp.eq.s32.totalorder %s39, 0
      %p390 = por %p388, %p389
      %s391 = ssub.s32 %s41, %s48
      %p392 = scmp.eq.s32.totalorder %s391, 0
      %s394 = sadd.s32 %s393, 1
      %s395 = scalar_select %p392, %s393, %s394
      %p398 = pneg %p392
      %p399 = scmp.eq.s32.totalorder %s33, 1
      %p400 = por %p398, %p399
      %p401 = scmp.ne.s32.totalorder %s393, %s396
      %p402 = scmp.eq.s32.totalorder %s33, 0
      %p403 = por %p401, %p402
      %p404 = scmp.ne.s32.totalorder %s393, %s396
      %p405 = scmp.eq.s32.totalorder %s38, 1
      %p406 = por %p404, %p405
      %p407 = scmp.ne.s32.totalorder %s396, %s397
      %p408 = scmp.eq.s32.totalorder %s38, 0
      %p409 = por %p407, %p408
      %p410 = scmp.ne.s32.totalorder %s396, %s397
      %p411 = scmp.eq.s32.totalorder %s39, 1
      %p412 = por %p410, %p411
      %p414 = scmp.ne.s32.totalorder %s397, %s413
      %p415 = scmp.eq.s32.totalorder %s39, 0
      %p416 = por %p414, %p415
      %s417 = ssub.s32 %s41, %s48
      %p418 = scmp.eq.s32.totalorder %s417, 0
      %s420 = sadd.s32 %s419, 1
      %s421 = scalar_select %p418, %s419, %s420
      %p424 = pneg %p418
      %p425 = scmp.eq.s32.totalorder %s33, 1
      %p426 = por %p424, %p425
      %p427 = scmp.ne.s32.totalorder %s419, %s422
      %p428 = scmp.eq.s32.totalorder %s33, 0
      %p429 = por %p427, %p428
      %p430 = scmp.ne.s32.totalorder %s419, %s422
      %p431 = scmp.eq.s32.totalorder %s38, 1
      %p432 = por %p430, %p431
      %p433 = scmp.ne.s32.totalorder %s422, %s423
      %p434 = scmp.eq.s32.totalorder %s38, 0
      %p435 = por %p433, %p434
      %p436 = scmp.ne.s32.totalorder %s422, %s423
      %p437 = scmp.eq.s32.totalorder %s39, 1
      %p438 = por %p436, %p437
      %p440 = scmp.ne.s32.totalorder %s423, %s439
      %p441 = scmp.eq.s32.totalorder %s39, 0
      %p442 = por %p440, %p441
      %s443 = ssub.s32 %s41, %s48
      %p444 = scmp.eq.s32.totalorder %s443, 0
      %s446 = sadd.s32 %s445, 1
      %s447 = scalar_select %p444, %s445, %s446
      %p450 = pneg %p444
      %p451 = scmp.eq.s32.totalorder %s33, 1
      %p452 = por %p450, %p451
      %p453 = scmp.ne.s32.totalorder %s445, %s448
      %p454 = scmp.eq.s32.totalorder %s33, 0
      %p455 = por %p453, %p454
      %p456 = scmp.ne.s32.totalorder %s445, %s448
      %p457 = scmp.eq.s32.totalorder %s38, 1
      %p458 = por %p456, %p457
      %p459 = scmp.ne.s32.totalorder %s448, %s449
      %p460 = scmp.eq.s32.totalorder %s38, 0
      %p461 = por %p459, %p460
      %p462 = scmp.ne.s32.totalorder %s448, %s449
      %p463 = scmp.eq.s32.totalorder %s39, 1
      %p464 = por %p462, %p463
      %p466 = scmp.ne.s32.totalorder %s449, %s465
      %p467 = scmp.eq.s32.totalorder %s39, 0
      %p468 = por %p466, %p467
      %s469 = ssub.s32 %s41, %s48
      %p470 = scmp.eq.s32.totalorder %s469, 0
      %s472 = sadd.s32 %s471, 1
      %s473 = scalar_select %p470, %s471, %s472
      %p476 = pneg %p470
      %p477 = scmp.eq.s32.totalorder %s33, 1
      %p478 = por %p476, %p477
      %p479 = scmp.ne.s32.totalorder %s471, %s474
      %p480 = scmp.eq.s32.totalorder %s33, 0
      %p481 = por %p479, %p480
      %p482 = scmp.ne.s32.totalorder %s471, %s474
      %p483 = scmp.eq.s32.totalorder %s38, 1
      %p484 = por %p482, %p483
      %p485 = scmp.ne.s32.totalorder %s474, %s475
      %p486 = scmp.eq.s32.totalorder %s38, 0
      %p487 = por %p485, %p486
      %p488 = scmp.ne.s32.totalorder %s474, %s475
      %p489 = scmp.eq.s32.totalorder %s39, 1
      %p490 = por %p488, %p489
      %p492 = scmp.ne.s32.totalorder %s475, %s491
      %p493 = scmp.eq.s32.totalorder %s39, 0
      %p494 = por %p492, %p493
      %s495 = ssub.s32 %s41, %s48
      %p496 = scmp.eq.s32.totalorder %s495, 0
      %s498 = sadd.s32 %s497, 1
      %s499 = scalar_select %p496, %s497, %s498
      %p502 = pneg %p496
      %p503 = scmp.eq.s32.totalorder %s33, 1
      %p504 = por %p502, %p503
      %p505 = scmp.ne.s32.totalorder %s497, %s500
      %p506 = scmp.eq.s32.totalorder %s33, 0
      %p507 = por %p505, %p506
      %p508 = scmp.ne.s32.totalorder %s497, %s500
      %p509 = scmp.eq.s32.totalorder %s38, 1
      %p510 = por %p508, %p509
      %p511 = scmp.ne.s32.totalorder %s500, %s501
      %p512 = scmp.eq.s32.totalorder %s38, 0
      %p513 = por %p511, %p512
      %p514 = scmp.ne.s32.totalorder %s500, %s501
      %p515 = scmp.eq.s32.totalorder %s39, 1
      %p516 = por %p514, %p515
      %p518 = scmp.ne.s32.totalorder %s501, %s517
      %p519 = scmp.eq.s32.totalorder %s39, 0
      %p520 = por %p518, %p519
      %s521 = ssub.s32 %s41, %s48
      %p522 = scmp.eq.s32.totalorder %s521, 0
      %s524 = sadd.s32 %s523, 1
      %s525 = scalar_select %p522, %s523, %s524
      %p528 = pneg %p522
      %p529 = scmp.eq.s32.totalorder %s33, 1
      %p530 = por %p528, %p529
      %p531 = scmp.ne.s32.totalorder %s523, %s526
      %p532 = scmp.eq.s32.totalorder %s33, 0
      %p533 = por %p531, %p532
      %p534 = scmp.ne.s32.totalorder %s523, %s526
      %p535 = scmp.eq.s32.totalorder %s38, 1
      %p536 = por %p534, %p535
      %p537 = scmp.ne.s32.totalorder %s526, %s527
      %p538 = scmp.eq.s32.totalorder %s38, 0
      %p539 = por %p537, %p538
      %p540 = scmp.ne.s32.totalorder %s526, %s527
      %p541 = scmp.eq.s32.totalorder %s39, 1
      %p542 = por %p540, %p541
      %p544 = scmp.ne.s32.totalorder %s527, %s543
      %p545 = scmp.eq.s32.totalorder %s39, 0
      %p546 = por %p544, %p545
      %s547 = ssub.s32 %s41, %s48
      %p548 = scmp.eq.s32.totalorder %s547, 0
      %s550 = sadd.s32 %s549, 1
      %s551 = scalar_select %p548, %s549, %s550
      %p554 = pneg %p548
      %p555 = scmp.eq.s32.totalorder %s33, 1
      %p556 = por %p554, %p555
      %p557 = scmp.ne.s32.totalorder %s549, %s552
      %p558 = scmp.eq.s32.totalorder %s33, 0
      %p559 = por %p557, %p558
      %p560 = scmp.ne.s32.totalorder %s549, %s552
      %p561 = scmp.eq.s32.totalorder %s38, 1
      %p562 = por %p560, %p561
      %p563 = scmp.ne.s32.totalorder %s552, %s553
      %p564 = scmp.eq.s32.totalorder %s38, 0
      %p565 = por %p563, %p564
      %p566 = scmp.ne.s32.totalorder %s552, %s553
      %p567 = scmp.eq.s32.totalorder %s39, 1
      %p568 = por %p566, %p567
      %p570 = scmp.ne.s32.totalorder %s553, %s569
      %p571 = scmp.eq.s32.totalorder %s39, 0
      %p572 = por %p570, %p571
      %s573 = ssub.s32 %s40, %s52
      %p574 = scmp.eq.s32.totalorder %s573, 0
      %s576 = sadd.s32 %s575, 1
      %s577 = scalar_select %p574, %s575, %s576
      %p580 = pneg %p574
      %p581 = scmp.eq.s32.totalorder %s33, 1
      %p582 = por %p580, %p581
      %p583 = scmp.ne.s32.totalorder %s575, %s578
      %p584 = scmp.eq.s32.totalorder %s33, 0
      %p585 = por %p583, %p584
      %p586 = scmp.ne.s32.totalorder %s575, %s578
      %p587 = scmp.eq.s32.totalorder %s38, 1
      %p588 = por %p586, %p587
      %p589 = scmp.ne.s32.totalorder %s578, %s579
      %p590 = scmp.eq.s32.totalorder %s38, 0
      %p591 = por %p589, %p590
      %p592 = scmp.ne.s32.totalorder %s578, %s579
      %p593 = scmp.eq.s32.totalorder %s39, 1
      %p594 = por %p592, %p593
      %p596 = scmp.ne.s32.totalorder %s579, %s595
      %p597 = scmp.eq.s32.totalorder %s39, 0
      %p598 = por %p596, %p597
      %p599 = scmp.le.s32.totalorder 1, %s33
      %p600 = scmp.lt.s32.totalorder %s33, 3
      %p601 = pnand %p599, %p600
      %p602 = pneg %p601
      // Predicated region
      $region9: #{tpu_custom_call.1} parent=5 // pred_check
        _
      $region10: #{tpu_custom_call.1} parent=5 // pred_check_branch
        %604 = sbr.rel (%p601) target = $region12
      $region11: #{tpu_custom_call.1} parent=5 // pred_region
        %s605 = ssub.s32 %s33, 1
        // Predicated region
        $region13: #{tpu_custom_call.1} parent=11 // pred_check
          %p606 = pneg %p71
        $region14: #{tpu_custom_call.1} parent=11 // pred_check_branch
          %608 = sbr.rel (%p606) target = $region16
        $region15: #{tpu_custom_call.1} parent=11 // pred_region
          %s609 = smul.u32 2, %s42
          %p610 = scmp.lt.s32.totalorder %s609, 1
          %s611 = scalar_select %p610, %s609, 1
          %s612 = smul.addr %s611, 8
          %s613 = scalar_lea.vmem %s0, %s612
          %s614 = smul.u32 2, %s42
        $region16: #{tpu_custom_call.1} parent=11 // pred_fallthru
          _
        // Predicated region
        $region17: #{tpu_custom_call.1} parent=11 // pred_check
          %p615 = pneg %p97
        $region18: #{tpu_custom_call.1} parent=11 // pred_check_branch
          %617 = sbr.rel (%p615) target = $region20
        $region19: #{tpu_custom_call.1} parent=11 // pred_region
          %s618 = smul.u32 2, %s42
          %p619 = scmp.lt.s32.totalorder %s618, 1
          %s620 = scalar_select %p619, %s618, 1
          %s621 = smul.addr %s620, 8
          %s622 = scalar_lea.vmem %s1, %s621
          %s623 = smul.u32 2, %s42
        $region20: #{tpu_custom_call.1} parent=11 // pred_fallthru
          _
      $region12: #{tpu_custom_call.1} parent=5 // pred_fallthru
        _
      %p624 = scmp.lt.s32.totalorder %s33, 2
      // Predicated region
      $region21: #{tpu_custom_call.1} parent=5 // pred_check
        %p625 = pneg %p624
      $region22: #{tpu_custom_call.1} parent=5 // pred_check_branch
        %627 = sbr.rel (%p625) target = $region24
      $region23: #{tpu_custom_call.1} parent=5 // pred_region
        // Predicated region
        $region25: #{tpu_custom_call.1} parent=23 // pred_check
          %p628 = pneg %p117
        $region26: #{tpu_custom_call.1} parent=23 // pred_check_branch
          %630 = sbr.rel (%p628) target = $region28
        $region27: #{tpu_custom_call.1} parent=23 // pred_region
          %p631 = scmp.lt.s32.totalorder %s41, 1
          %s632 = scalar_select %p631, %s41, 1
          %s633 = smul.addr %s632, 4
          %s634 = smul.addr %s633, 8
          %s635 = scalar_lea.vmem %s2, %s634
        $region28: #{tpu_custom_call.1} parent=23 // pred_fallthru
          _
        // Predicated region
        $region29: #{tpu_custom_call.1} parent=23 // pred_check
          %p636 = pneg %p143
        $region30: #{tpu_custom_call.1} parent=23 // pred_check_branch
          %638 = sbr.rel (%p636) target = $region32
        $region31: #{tpu_custom_call.1} parent=23 // pred_region
          %p639 = scmp.lt.s32.totalorder %s41, 1
          %s640 = scalar_select %p639, %s41, 1
          %s641 = scalar_lea.vmem %s3, %s640
        $region32: #{tpu_custom_call.1} parent=23 // pred_fallthru
          _
        // Predicated region
        $region33: #{tpu_custom_call.1} parent=23 // pred_check
          %p642 = pneg %p169
        $region34: #{tpu_custom_call.1} parent=23 // pred_check_branch
          %644 = sbr.rel (%p642) target = $region36
        $region35: #{tpu_custom_call.1} parent=23 // pred_region
          %p645 = scmp.lt.s32.totalorder %s41, 1
          %s646 = scalar_select %p645, %s41, 1
          %s647 = smul.addr %s646, 2
          %s648 = smul.addr %s647, 8
          %s649 = scalar_lea.vmem %s4, %s648
        $region36: #{tpu_custom_call.1} parent=23 // pred_fallthru
          _
        // Predicated region
        $region37: #{tpu_custom_call.1} parent=23 // pred_check
          %p650 = pneg %p195
        $region38: #{tpu_custom_call.1} parent=23 // pred_check_branch
          %652 = sbr.rel (%p650) target = $region40
        $region39: #{tpu_custom_call.1} parent=23 // pred_region
          %p653 = scmp.lt.s32.totalorder %s41, 1
          %s654 = scalar_select %p653, %s41, 1
          %s655 = scalar_lea.vmem %s5, %s654
        $region40: #{tpu_custom_call.1} parent=23 // pred_fallthru
          _
        // Predicated region
        $region41: #{tpu_custom_call.1} parent=23 // pred_check
          %p656 = pneg %p221
        $region42: #{tpu_custom_call.1} parent=23 // pred_check_branch
          %658 = sbr.rel (%p656) target = $region44
        $region43: #{tpu_custom_call.1} parent=23 // pred_region
          %p659 = scmp.lt.s32.totalorder %s41, 1
          %s660 = scalar_select %p659, %s41, 1
          %s661 = smul.addr %s660, 8
          %s662 = smul.addr %s661, 8
          %s663 = scalar_lea.vmem %s6, %s662
        $region44: #{tpu_custom_call.1} parent=23 // pred_fallthru
          _
        // Predicated region
        $region45: #{tpu_custom_call.1} parent=23 // pred_check
          %p664 = pneg %p247
        $region46: #{tpu_custom_call.1} parent=23 // pred_check_branch
          %666 = sbr.rel (%p664) target = $region48
        $region47: #{tpu_custom_call.1} parent=23 // pred_region
          %p667 = scmp.lt.s32.totalorder %s41, 1
          %s668 = scalar_select %p667, %s41, 1
          %s669 = scalar_lea.vmem %s7, %s668
        $region48: #{tpu_custom_call.1} parent=23 // pred_fallthru
          _
        // Predicated region
        $region49: #{tpu_custom_call.1} parent=23 // pred_check
          %p670 = pneg %p273
        $region50: #{tpu_custom_call.1} parent=23 // pred_check_branch
          %672 = sbr.rel (%p670) target = $region52
        $region51: #{tpu_custom_call.1} parent=23 // pred_region
          %p673 = scmp.lt.s32.totalorder %s41, 1
          %s674 = scalar_select %p673, %s41, 1
          %s675 = smul.addr %s674, 8
          %s676 = smul.addr %s675, 8
          %s677 = scalar_lea.vmem %s8, %s676
        $region52: #{tpu_custom_call.1} parent=23 // pred_fallthru
          _
        // Predicated region
        $region53: #{tpu_custom_call.1} parent=23 // pred_check
          %p678 = pneg %p299
        $region54: #{tpu_custom_call.1} parent=23 // pred_check_branch
          %680 = sbr.rel (%p678) target = $region56
        $region55: #{tpu_custom_call.1} parent=23 // pred_region
          %p681 = scmp.lt.s32.totalorder %s41, 1
          %s682 = scalar_select %p681, %s41, 1
          %s683 = scalar_lea.vmem %s9, %s682
        $region56: #{tpu_custom_call.1} parent=23 // pred_fallthru
          _
        // Predicated region
        $region57: #{tpu_custom_call.1} parent=23 // pred_check
          %p684 = pneg %p325
        $region58: #{tpu_custom_call.1} parent=23 // pred_check_branch
          %686 = sbr.rel (%p684) target = $region60
        $region59: #{tpu_custom_call.1} parent=23 // pred_region
          %p687 = scmp.lt.s32.totalorder %s41, 1
          %s688 = scalar_select %p687, %s41, 1
          %s689 = smul.addr %s688, 8
          %s690 = smul.addr %s689, 8
          %s691 = scalar_lea.vmem %s10, %s690
        $region60: #{tpu_custom_call.1} parent=23 // pred_fallthru
          _
        // Predicated region
        $region61: #{tpu_custom_call.1} parent=23 // pred_check
          %p692 = pneg %p351
        $region62: #{tpu_custom_call.1} parent=23 // pred_check_branch
          %694 = sbr.rel (%p692) target = $region64
        $region63: #{tpu_custom_call.1} parent=23 // pred_region
          %p695 = scmp.lt.s32.totalorder %s41, 1
          %s696 = scalar_select %p695, %s41, 1
          %s697 = scalar_lea.vmem %s11, %s696
        $region64: #{tpu_custom_call.1} parent=23 // pred_fallthru
          _
        // Predicated region
        $region65: #{tpu_custom_call.1} parent=23 // pred_check
          %p698 = pneg %p377
        $region66: #{tpu_custom_call.1} parent=23 // pred_check_branch
          %700 = sbr.rel (%p698) target = $region68
        $region67: #{tpu_custom_call.1} parent=23 // pred_region
          %s701 = sand.u32 %s367, 1
          %s702 = scalar_lea.sflag [#allocation3], %s701
          %s703 = sand.u32 %s367, 1
          %s704 = smul.addr %s703, 64
          %s705 = scalar_lea.vmem [#allocation2], %s704
          %707 = vsyncadd %s702, 0
          %s708 = smul.addr %s41, 8
          %s709 = smul.addr %s708, 8
          %s710 = scalar_lea.hbm %s12, %s709
          %s711 = sshll.u32 %s710, 4
          %s712 = int_to_ptr.hbm [resolvable:$true] %s711
          %s713 = sshll.u32 %s705, 4
          %s714 = int_to_ptr.vmem [resolvable:$true] %s713
          %719 = dma.hbm_to_vmem [thread:$0]  %s712, 1024, %s714, %s702, 128, 128, 8
        $region68: #{tpu_custom_call.1} parent=23 // pred_fallthru
          _
        // Predicated region
        $region69: #{tpu_custom_call.1} parent=23 // pred_check
          %p720 = pneg %p403
        $region70: #{tpu_custom_call.1} parent=23 // pred_check_branch
          %722 = sbr.rel (%p720) target = $region72
        $region71: #{tpu_custom_call.1} parent=23 // pred_region
          %p723 = scmp.lt.s32.totalorder %s41, 1
          %s724 = scalar_select %p723, %s41, 1
          %s725 = scalar_lea.vmem %s13, %s724
        $region72: #{tpu_custom_call.1} parent=23 // pred_fallthru
          _
        // Predicated region
        $region73: #{tpu_custom_call.1} parent=23 // pred_check
          %p726 = pneg %p429
        $region74: #{tpu_custom_call.1} parent=23 // pred_check_branch
          %728 = sbr.rel (%p726) target = $region76
        $region75: #{tpu_custom_call.1} parent=23 // pred_region
          %p729 = scmp.lt.s32.totalorder %s41, 1
          %s730 = scalar_select %p729, %s41, 1
          %s731 = smul.addr %s730, 16
          %s732 = smul.addr %s731, 8
          %s733 = scalar_lea.vmem %s14, %s732
        $region76: #{tpu_custom_call.1} parent=23 // pred_fallthru
          _
        // Predicated region
        $region77: #{tpu_custom_call.1} parent=23 // pred_check
          %p734 = pneg %p455
        $region78: #{tpu_custom_call.1} parent=23 // pred_check_branch
          %736 = sbr.rel (%p734) target = $region80
        $region79: #{tpu_custom_call.1} parent=23 // pred_region
          %p737 = scmp.lt.s32.totalorder %s41, 1
          %s738 = scalar_select %p737, %s41, 1
          %s739 = scalar_lea.vmem %s15, %s738
        $region80: #{tpu_custom_call.1} parent=23 // pred_fallthru
          _
        // Predicated region
        $region81: #{tpu_custom_call.1} parent=23 // pred_check
          %p740 = pneg %p481
        $region82: #{tpu_custom_call.1} parent=23 // pred_check_branch
          %742 = sbr.rel (%p740) target = $region84
        $region83: #{tpu_custom_call.1} parent=23 // pred_region
          %s743 = sand.u32 %s471, 1
          %s744 = scalar_lea.sflag [#allocation6], %s743
          %s745 = sand.u32 %s471, 1
          %s746 = smul.addr %s745, 64
          %s747 = scalar_lea.vmem [#allocation5], %s746
          %749 = vsyncadd %s744, 0
          %s750 = smul.addr %s41, 8
          %s751 = smul.addr %s750, 8
          %s752 = scalar_lea.hbm %s16, %s751
          %s753 = sshll.u32 %s752, 4
          %s754 = int_to_ptr.hbm [resolvable:$true] %s753
          %s755 = sshll.u32 %s747, 4
          %s756 = int_to_ptr.vmem [resolvable:$true] %s755
          %761 = dma.hbm_to_vmem [thread:$0]  %s754, 1024, %s756, %s744, 128, 128, 8
        $region84: #{tpu_custom_call.1} parent=23 // pred_fallthru
          _
        // Predicated region
        $region85: #{tpu_custom_call.1} parent=23 // pred_check
          %p762 = pneg %p507
        $region86: #{tpu_custom_call.1} parent=23 // pred_check_branch
          %764 = sbr.rel (%p762) target = $region88
        $region87: #{tpu_custom_call.1} parent=23 // pred_region
          %p765 = scmp.lt.s32.totalorder %s41, 1
          %s766 = scalar_select %p765, %s41, 1
          %s767 = scalar_lea.vmem %s17, %s766
        $region88: #{tpu_custom_call.1} parent=23 // pred_fallthru
          _
        // Predicated region
        $region89: #{tpu_custom_call.1} parent=23 // pred_check
          %p768 = pneg %p533
        $region90: #{tpu_custom_call.1} parent=23 // pred_check_branch
          %770 = sbr.rel (%p768) target = $region92
        $region91: #{tpu_custom_call.1} parent=23 // pred_region
          %p771 = scmp.lt.s32.totalorder %s41, 1
          %s772 = scalar_select %p771, %s41, 1
          %s773 = scalar_lea.vmem %s18, %s772
        $region92: #{tpu_custom_call.1} parent=23 // pred_fallthru
          _
        // Predicated region
        $region93: #{tpu_custom_call.1} parent=23 // pred_check
          %p774 = pneg %p559
        $region94: #{tpu_custom_call.1} parent=23 // pred_check_branch
          %776 = sbr.rel (%p774) target = $region96
        $region95: #{tpu_custom_call.1} parent=23 // pred_region
          %p777 = scmp.lt.s32.totalorder %s41, 1
          %s778 = scalar_select %p777, %s41, 1
          %s779 = scalar_lea.vmem %s19, %s778
        $region96: #{tpu_custom_call.1} parent=23 // pred_fallthru
          _
      $region24: #{tpu_custom_call.1} parent=5 // pred_fallthru
        _
      %p780 = scmp.le.s32.totalorder 1, %s33
      %p781 = scmp.lt.s32.totalorder %s33, 3
      %p782 = pnand %p780, %p781
      %p783 = pneg %p782
      // Predicated region
      $region97: #{tpu_custom_call.1} parent=5 // pred_check
        _
      $region98: #{tpu_custom_call.1} parent=5 // pred_check_branch
        %785 = sbr.rel (%p782) target = $region100
      $region99: #{tpu_custom_call.1} parent=5 // pred_region
        %s786 = ssub.s32 %s33, 1
        %s787 = sand.u32 %s370, 1
        %s788 = scalar_lea.sflag [#allocation3], %s787
        %s789 = sand.u32 %s370, 1
        %s790 = smul.addr %s789, 64
        %s791 = scalar_lea.vmem [#allocation2], %s790
        // Predicated region
        $region101: #{tpu_custom_call.1} parent=99 // pred_check
          %p792 = pneg %p383
        $region102: #{tpu_custom_call.1} parent=99 // pred_check_branch
          %794 = sbr.rel (%p792) target = $region104
        $region103: #{tpu_custom_call.1} parent=99 // pred_region
          %796 = dma.done %s788, 1024
        $region104: #{tpu_custom_call.1} parent=99 // pred_fallthru
          _
        %s797 = sand.u32 %s474, 1
        %s798 = scalar_lea.sflag [#allocation6], %s797
        %s799 = sand.u32 %s474, 1
        %s800 = smul.addr %s799, 64
        %s801 = scalar_lea.vmem [#allocation5], %s800
        // Predicated region
        $region105: #{tpu_custom_call.1} parent=99 // pred_check
          %p802 = pneg %p487
        $region106: #{tpu_custom_call.1} parent=99 // pred_check_branch
          %804 = sbr.rel (%p802) target = $region108
        $region107: #{tpu_custom_call.1} parent=99 // pred_region
          %806 = dma.done %s798, 1024
        $region108: #{tpu_custom_call.1} parent=99 // pred_fallthru
          _
        %s807 = smul.u32 2, %s42
        %p808 = scmp.lt.s32.totalorder %s807, 1
        %s809 = scalar_select %p808, %s807, 1
        %s810 = smul.addr %s809, 8
        %s811 = scalar_lea.vmem %s0, %s810
        %p812 = pneg %p71
        %p813 = pneg %p68
        %s814 = smul.u32 2, %s42
        %p815 = scmp.lt.s32.totalorder %s814, 1
        %s816 = scalar_select %p815, %s814, 1
        %s817 = smul.addr %s816, 8
        %s818 = scalar_lea.vmem %s1, %s817
        %p819 = pneg %p97
        %p820 = pneg %p94
        %p821 = scmp.lt.s32.totalorder %s43, 1
        %s822 = scalar_select %p821, %s43, 1
        %s823 = smul.addr %s822, 4
        %s824 = smul.addr %s823, 8
        %s825 = scalar_lea.vmem %s2, %s824
        %p826 = pneg %p123
        %p827 = pneg %p120
        %p828 = scmp.lt.s32.totalorder %s43, 1
        %s829 = scalar_select %p828, %s43, 1
        %s830 = scalar_lea.vmem %s3, %s829
        %p831 = pneg %p149
        %p832 = pneg %p146
        %p833 = scmp.lt.s32.totalorder %s43, 1
        %s834 = scalar_select %p833, %s43, 1
        %s835 = smul.addr %s834, 2
        %s836 = smul.addr %s835, 8
        %s837 = scalar_lea.vmem %s4, %s836
        %p838 = pneg %p175
        %p839 = pneg %p172
        %p840 = scmp.lt.s32.totalorder %s43, 1
        %s841 = scalar_select %p840, %s43, 1
        %s842 = scalar_lea.vmem %s5, %s841
        %p843 = pneg %p201
        %p844 = pneg %p198
        %p845 = scmp.lt.s32.totalorder %s43, 1
        %s846 = scalar_select %p845, %s43, 1
        %s847 = smul.addr %s846, 8
        %s848 = smul.addr %s847, 8
        %s849 = scalar_lea.vmem %s6, %s848
        %p850 = pneg %p227
        %p851 = pneg %p224
        %p852 = scmp.lt.s32.totalorder %s43, 1
        %s853 = scalar_select %p852, %s43, 1
        %s854 = scalar_lea.vmem %s7, %s853
        %p855 = pneg %p253
        %p856 = pneg %p250
        %p857 = scmp.lt.s32.totalorder %s43, 1
        %s858 = scalar_select %p857, %s43, 1
        %s859 = smul.addr %s858, 8
        %s860 = smul.addr %s859, 8
        %s861 = scalar_lea.vmem %s8, %s860
        %p862 = pneg %p279
        %p863 = pneg %p276
        %p864 = scmp.lt.s32.totalorder %s43, 1
        %s865 = scalar_select %p864, %s43, 1
        %s866 = scalar_lea.vmem %s9, %s865
        %p867 = pneg %p305
        %p868 = pneg %p302
        %p869 = scmp.lt.s32.totalorder %s43, 1
        %s870 = scalar_select %p869, %s43, 1
        %s871 = smul.addr %s870, 8
        %s872 = smul.addr %s871, 8
        %s873 = scalar_lea.vmem %s10, %s872
        %p874 = pneg %p331
        %p875 = pneg %p328
        %p876 = scmp.lt.s32.totalorder %s43, 1
        %s877 = scalar_select %p876, %s43, 1
        %s878 = scalar_lea.vmem %s11, %s877
        %p879 = pneg %p357
        %p880 = pneg %p354
        %s881 = sand.u32 %s370, 1
        %s882 = scalar_lea.sflag [#allocation3], %s881
        %s883 = sand.u32 %s370, 1
        %s884 = smul.addr %s883, 64
        %s885 = scalar_lea.vmem [#allocation2], %s884
        %p886 = pneg %p383
        %p887 = pneg %p380
        %p888 = scmp.lt.s32.totalorder %s43, 1
        %s889 = scalar_select %p888, %s43, 1
        %s890 = scalar_lea.vmem %s13, %s889
        %p891 = pneg %p409
        %p892 = pneg %p406
        %p893 = scmp.lt.s32.totalorder %s43, 1
        %s894 = scalar_select %p893, %s43, 1
        %s895 = smul.addr %s894, 16
        %s896 = smul.addr %s895, 8
        %s897 = scalar_lea.vmem %s14, %s896
        %p898 = pneg %p435
        %p899 = pneg %p432
        %p900 = scmp.lt.s32.totalorder %s43, 1
        %s901 = scalar_select %p900, %s43, 1
        %s902 = scalar_lea.vmem %s15, %s901
        %p903 = pneg %p461
        %p904 = pneg %p458
        %s905 = sand.u32 %s474, 1
        %s906 = scalar_lea.sflag [#allocation6], %s905
        %s907 = sand.u32 %s474, 1
        %s908 = smul.addr %s907, 64
        %s909 = scalar_lea.vmem [#allocation5], %s908
        %p910 = pneg %p487
        %p911 = pneg %p484
        %p912 = scmp.lt.s32.totalorder %s43, 1
        %s913 = scalar_select %p912, %s43, 1
        %s914 = scalar_lea.vmem %s17, %s913
        %p915 = pneg %p513
        %p916 = pneg %p510
        %p917 = scmp.lt.s32.totalorder %s43, 1
        %s918 = scalar_select %p917, %s43, 1
        %s919 = scalar_lea.vmem %s18, %s918
        %p920 = pneg %p539
        %p921 = pneg %p536
        %p922 = scmp.lt.s32.totalorder %s43, 1
        %s923 = scalar_select %p922, %s43, 1
        %s924 = scalar_lea.vmem %s19, %s923
        %p925 = pneg %p565
        %p926 = pneg %p562
        %p927 = pneg %p591
        %p928 = pneg %p588
        %s929 = smul.u32 2, %s42
        %p930 = scmp.lt.s32.totalorder %s929, 1
        %s931 = scalar_select %p930, %s929, 1
        %s932 = smul.addr %s931, 8
        %s933 = scalar_lea.vmem %s0, %s932
        %s934 = smul.u32 2, %s42
        %s935 = smul.u32 2, %s42
        %p936 = scmp.lt.s32.totalorder %s935, 1
        %s937 = scalar_select %p936, %s935, 1
        %s938 = smul.addr %s937, 8
        %s939 = scalar_lea.vmem %s1, %s938
        %s940 = smul.u32 2, %s42
        %p941 = scmp.lt.s32.totalorder %s43, 1
        %s942 = scalar_select %p941, %s43, 1
        %s943 = smul.addr %s942, 4
        %s944 = smul.addr %s943, 8
        %s945 = scalar_lea.vmem %s2, %s944
        %p946 = scmp.lt.s32.totalorder %s43, 1
        %s947 = scalar_select %p946, %s43, 1
        %s948 = scalar_lea.vmem %s3, %s947
        %p949 = scmp.lt.s32.totalorder %s43, 1
        %s950 = scalar_select %p949, %s43, 1
        %s951 = smul.addr %s950, 2
        %s952 = smul.addr %s951, 8
        %s953 = scalar_lea.vmem %s4, %s952
        %p954 = scmp.lt.s32.totalorder %s43, 1
        %s955 = scalar_select %p954, %s43, 1
        %s956 = scalar_lea.vmem %s5, %s955
        %p957 = scmp.lt.s32.totalorder %s43, 1
        %s958 = scalar_select %p957, %s43, 1
        %s959 = smul.addr %s958, 8
        %s960 = smul.addr %s959, 8
        %s961 = scalar_lea.vmem %s6, %s960
        %p962 = scmp.lt.s32.totalorder %s43, 1
        %s963 = scalar_select %p962, %s43, 1
        %s964 = scalar_lea.vmem %s7, %s963
        %p965 = scmp.lt.s32.totalorder %s43, 1
        %s966 = scalar_select %p965, %s43, 1
        %s967 = smul.addr %s966, 8
        %s968 = smul.addr %s967, 8
        %s969 = scalar_lea.vmem %s8, %s968
        %p970 = scmp.lt.s32.totalorder %s43, 1
        %s971 = scalar_select %p970, %s43, 1
        %s972 = scalar_lea.vmem %s9, %s971
        %p973 = scmp.lt.s32.totalorder %s43, 1
        %s974 = scalar_select %p973, %s43, 1
        %s975 = smul.addr %s974, 8
        %s976 = smul.addr %s975, 8
        %s977 = scalar_lea.vmem %s10, %s976
        %p978 = scmp.lt.s32.totalorder %s43, 1
        %s979 = scalar_select %p978, %s43, 1
        %s980 = scalar_lea.vmem %s11, %s979
        %p981 = scmp.lt.s32.totalorder %s43, 1
        %s982 = scalar_select %p981, %s43, 1
        %s983 = scalar_lea.vmem %s13, %s982
        %p984 = scmp.lt.s32.totalorder %s43, 1
        %s985 = scalar_select %p984, %s43, 1
        %s986 = smul.addr %s985, 16
        %s987 = smul.addr %s986, 8
        %s988 = scalar_lea.vmem %s14, %s987
        %p989 = scmp.lt.s32.totalorder %s43, 1
        %s990 = scalar_select %p989, %s43, 1
        %s991 = scalar_lea.vmem %s15, %s990
        %p992 = scmp.lt.s32.totalorder %s43, 1
        %s993 = scalar_select %p992, %s43, 1
        %s994 = scalar_lea.vmem %s17, %s993
        %p995 = scmp.lt.s32.totalorder %s43, 1
        %s996 = scalar_select %p995, %s43, 1
        %s997 = scalar_lea.vmem %s18, %s996
        %p998 = scmp.lt.s32.totalorder %s43, 1
        %s999 = scalar_select %p998, %s43, 1
        %s1000 = scalar_lea.vmem %s19, %s999
        %s1001 = smul.u32 2, %s42
        %p1002 = scmp.eq.s32.totalorder %s43, 0
        // Predicated region
        $region109: #{tpu_custom_call.1} parent=99 // pred_check
          %p1003 = pneg %p1002
        $region110: #{tpu_custom_call.1} parent=99 // pred_check_branch
          %1005 = sbr.rel (%p1003) target = $region112
        $region111: #{tpu_custom_call.1} parent=99 // pred_region
          %v1006 = vld [vmem:[%s933] sm:$0xff]
          %v1007 = vld [vmem:[%s933 + $0x8] sm:$0xff]
          %vm1008 = vcmask 523264
          %1009 = vst.msk [vmem:[#allocation7] sm:$0xff] %vm1008, %v1006
          %1010 = vst.msk [vmem:[#allocation7 + $0x8] sm:$0xff] %vm1008, %v1007
        $region112: #{tpu_custom_call.1} parent=99 // pred_fallthru
          _
        %v1011 = vld [vmem:[#allocation7] sm:$0xff]
        %v1012 = vld [vmem:[#allocation7 + $0x8] sm:$0xff]
        %v1013 = vld [vmem:[%s939] sm:$0xff]
        %v1014 = vld [vmem:[%s939 + $0x8] sm:$0xff]
        %v1015 = vld [vmem:[%s945] sm:$0xff]
        %v1016 = vld [vmem:[%s945 + $0x8] sm:$0xff]
        %v1017 = vld [vmem:[%s945 + $0x10] sm:$0xff]
        %v1018 = vld [vmem:[%s945 + $0x18] sm:$0xff]
        %v1019 = vld [vmem:[%s948] sm:$0x1]
        %v1021 = vperm.slane %v1019, 0
        %vm1023 = vcmask 261120
        %v1025 = vsel %vm1023, %v1013, 0
        %v1028 = vsel %vm1023, %v1014, 0
        %1030 = vmatpush.msra.mxu0 0.0
        %1031 = vmatpush.msra.mxu0 0.0
        %1032 = vmatpush.msra.mxu0 0.0
        %1033 = vmatpush.msra.mxu0 0.0
        %1034 = vmatpush.msra.mxu0 0.0
        %1035 = vmatpush.msra.mxu0 0.0
        %1036 = vmatpush.msra.mxu0 0.0
        %1037 = vmatpush.msra.mxu0 0.0
        %1038 = vmatpush.msra.mxu0 0.0
        %1039 = vmatpush.msra.mxu0 0.0
        %1040 = vmatpush.msra.mxu0 0.0
        %1041 = vmatpush.msra.mxu0 0.0
        %1042 = vmatpush.msra.mxu0 %v1018
        %1043 = vmatpush.msra.mxu0 %v1017
        %1044 = vmatpush.msra.mxu0 %v1016
        %1045 = vmatpush.msra.mxu0 %v1015
        %1046 = vmatmul.f32.gmra.mxu0 %v1025
        %v1047 = vpop.f32.mrf.mxu0
        %v1048 = vadd.f32 %v1021, %v1047
        %1049 = vmatmul.f32.gmra.mxu0 %v1028
        %v1050 = vpop.f32.mrf.mxu0
        %v1051 = vadd.f32 %v1021, %v1050
        %1052 = vdwg.mxu0
        %v1053 = vmul.f32 %v1048, 0.5
        %v1054 = vmul.f32 %v1051, 0.5
        %v1055 = vmul.f32 %v1048, 0.70710677
        %v1056 = vmul.f32 %v1051, 0.70710677
        %v1057 = vmul.f32 %v1055, %v1055
        %v1058 = vmin.f32 16.0, %v1057
        %v1059 = vmul.f32 %v1058, 2.1237322e-06
        %v1060 = vadd.f32 %v1059, 0.00028619796
        %v1061 = vmul.f32 %v1058, %v1060
        %v1062 = vadd.f32 %v1061, 0.0036580483
        %v1063 = vmul.f32 %v1058, %v1062
        %v1064 = vadd.f32 %v1063, 0.05243302
        %v1065 = vmul.f32 %v1058, %v1064
        %v1066 = vadd.f32 %v1065, 0.18741608
        %v1067 = vmul.f32 %v1058, %v1066
        %v1068 = vadd.f32 %v1067, 1.1283791
        %v1069 = vmul.f32 %v1055, %v1068
        %v1070 = vmul.f32 %v1058, 3.8918573e-05
        %v1071 = vadd.f32 %v1070, 0.001143296
        %v1072 = vmul.f32 %v1058, %v1071
        %v1073 = vadd.f32 %v1072, 0.014752088
        %v1074 = vmul.f32 %v1058, %v1073
        %v1075 = vadd.f32 %v1074, 0.112945676
        %v1076 = vmul.f32 %v1058, %v1075
        %v1077 = vadd.f32 %v1076, 0.4994258
        %v1078 = vmul.f32 %v1058, %v1077
        %v1079 = vadd.f32 %v1078, 1.0
        %v1080 = vrcp.pop %v1079
        %v1081 = vmul.f32 %v1079, %v1080
        %v1082 = vsub.f32 1.0, %v1081
        %v1083 = vmul.f32 %v1080, %v1082
        %v1084 = vadd.f32 %v1080, %v1083
        %vm1085 = vweird.f32 %v1079
        %vm1086 = vweird.f32 %v1080
        %vm1087 = vmor %vm1085, %vm1086
        %v1088 = vsel %vm1087, %v1080, %v1084
        %v1089 = vand.u32 2147483647, %v1079
        %vm1090 = vcmp.eq.f32.partialorder %v1089, 8.507059e+37
        %v1091 = vand.u32 %v1079, 2147483648
        %v1092 = vor.u32 1.1754944e-38, %v1091
        %v1093 = vsel %vm1090, %v1092, %v1088
        %v1094 = vmul.f32 %v1069, %v1093
        %v1095 = vmin.f32 %v1094, 1.0
        %v1096 = vmax.f32 %v1095, -1.0
        %v1097 = vmul.f32 %v1056, %v1056
        %v1098 = vmin.f32 16.0, %v1097
        %v1099 = vmul.f32 %v1098, 2.1237322e-06
        %v1100 = vadd.f32 %v1099, 0.00028619796
        %v1101 = vmul.f32 %v1098, %v1100
        %v1102 = vadd.f32 %v1101, 0.0036580483
        %v1103 = vmul.f32 %v1098, %v1102
        %v1104 = vadd.f32 %v1103, 0.05243302
        %v1105 = vmul.f32 %v1098, %v1104
        %v1106 = vadd.f32 %v1105, 0.18741608
        %v1107 = vmul.f32 %v1098, %v1106
        %v1108 = vadd.f32 %v1107, 1.1283791
        %v1109 = vmul.f32 %v1056, %v1108
        %v1110 = vmul.f32 %v1098, 3.8918573e-05
        %v1111 = vadd.f32 %v1110, 0.001143296
        %v1112 = vmul.f32 %v1098, %v1111
        %v1113 = vadd.f32 %v1112, 0.014752088
        %v1114 = vmul.f32 %v1098, %v1113
        %v1115 = vadd.f32 %v1114, 0.112945676
        %v1116 = vmul.f32 %v1098, %v1115
        %v1117 = vadd.f32 %v1116, 0.4994258
        %v1118 = vmul.f32 %v1098, %v1117
        %v1119 = vadd.f32 %v1118, 1.0
        %v1120 = vrcp.pop %v1119
        %v1121 = vmul.f32 %v1119, %v1120
        %v1122 = vsub.f32 1.0, %v1121
        %v1123 = vmul.f32 %v1120, %v1122
        %v1124 = vadd.f32 %v1120, %v1123
        %vm1125 = vweird.f32 %v1119
        %vm1126 = vweird.f32 %v1120
        %vm1127 = vmor %vm1125, %vm1126
        %v1128 = vsel %vm1127, %v1120, %v1124
        %v1129 = vand.u32 2147483647, %v1119
        %vm1130 = vcmp.eq.f32.partialorder %v1129, 8.507059e+37
        %v1131 = vand.u32 %v1119, 2147483648
        %v1132 = vor.u32 1.1754944e-38, %v1131
        %v1133 = vsel %vm1130, %v1132, %v1128
        %v1134 = vmul.f32 %v1109, %v1133
        %v1135 = vmin.f32 %v1134, 1.0
        %v1136 = vmax.f32 %v1135, -1.0
        %v1137 = vadd.f32 %v1096, 1.0
        %v1138 = vadd.f32 %v1136, 1.0
        %v1139 = vmul.f32 %v1053, %v1137
        %v1140 = vmul.f32 %v1054, %v1138
        %v1141 = vld [vmem:[%s953] sm:$0xff]
        %v1142 = vld [vmem:[%s953 + $0x8] sm:$0xff]
        %v1143 = vld [vmem:[%s956] sm:$0x1]
        %v1145 = vperm.slane %v1143, 0
        %vm1147 = vcmask 130048
        %v1149 = vsel %vm1147, %v1139, 0
        %v1152 = vsel %vm1147, %v1140, 0
        %1154 = vmatpush.msra.mxu0 0.0
        %1155 = vmatpush.msra.mxu0 0.0
        %1156 = vmatpush.msra.mxu0 0.0
        %1157 = vmatpush.msra.mxu0 0.0
        %1158 = vmatpush.msra.mxu0 0.0
        %1159 = vmatpush.msra.mxu0 0.0
        %1160 = vmatpush.msra.mxu0 0.0
        %1161 = vmatpush.msra.mxu0 0.0
        %1162 = vmatpush.msra.mxu0 0.0
        %1163 = vmatpush.msra.mxu0 0.0
        %1164 = vmatpush.msra.mxu0 0.0
        %1165 = vmatpush.msra.mxu0 0.0
        %1166 = vmatpush.msra.mxu0 0.0
        %1167 = vmatpush.msra.mxu0 0.0
        %1168 = vmatpush.msra.mxu0 %v1142
        %1169 = vmatpush.msra.mxu0 %v1141
        %1170 = vmatmul.f32.gmra.mxu0 %v1149
        %v1171 = vpop.f32.mrf.mxu0
        %v1172 = vadd.f32 %v1145, %v1171
        %1173 = vmatmul.f32.gmra.mxu0 %v1152
        %v1174 = vpop.f32.mrf.mxu0
        %v1175 = vadd.f32 %v1145, %v1174
        %1176 = vdwg.mxu0
        %v1177 = vld [vmem:[%s961] sm:$0xff]
        %v1178 = vld [vmem:[%s961 + $0x8] sm:$0xff]
        %v1179 = vld [vmem:[%s961 + $0x10] sm:$0xff]
        %v1180 = vld [vmem:[%s961 + $0x18] sm:$0xff]
        %v1181 = vld [vmem:[%s961 + $0x20] sm:$0xff]
        %v1182 = vld [vmem:[%s961 + $0x28] sm:$0xff]
        %v1183 = vld [vmem:[%s961 + $0x30] sm:$0xff]
        %v1184 = vld [vmem:[%s961 + $0x38] sm:$0xff]
        %v1185 = vld [vmem:[%s964] sm:$0x1]
        %v1187 = vperm.slane %v1185, 0
        %vm1189 = vcmask 523264
        %v1191 = vsel %vm1189, %v1172, 0
        %v1194 = vsel %vm1189, %v1175, 0
        %1196 = vmatpush.msra.mxu0 0.0
        %1197 = vmatpush.msra.mxu0 0.0
        %1198 = vmatpush.msra.mxu0 0.0
        %1199 = vmatpush.msra.mxu0 0.0
        %1200 = vmatpush.msra.mxu0 0.0
        %1201 = vmatpush.msra.mxu0 0.0
        %1202 = vmatpush.msra.mxu0 0.0
        %1203 = vmatpush.msra.mxu0 0.0
        %1204 = vmatpush.msra.mxu0 %v1184
        %1205 = vmatpush.msra.mxu0 %v1183
        %1206 = vmatpush.msra.mxu0 %v1182
        %1207 = vmatpush.msra.mxu0 %v1181
        %1208 = vmatpush.msra.mxu0 %v1180
        %1209 = vmatpush.msra.mxu0 %v1179
        %1210 = vmatpush.msra.mxu0 %v1178
        %1211 = vmatpush.msra.mxu0 %v1177
        %1212 = vmatmul.f32.gmra.mxu0 %v1191
        %v1213 = vpop.f32.mrf.mxu0
        %v1214 = vadd.f32 %v1187, %v1213
        %1215 = vmatmul.f32.gmra.mxu0 %v1194
        %v1216 = vpop.f32.mrf.mxu0
        %v1217 = vadd.f32 %v1187, %v1216
        %1218 = vdwg.mxu0
        %v1219 = vld [vmem:[%s969] sm:$0xff]
        %v1220 = vld [vmem:[%s969 + $0x8] sm:$0xff]
        %v1221 = vld [vmem:[%s969 + $0x10] sm:$0xff]
        %v1222 = vld [vmem:[%s969 + $0x18] sm:$0xff]
        %v1223 = vld [vmem:[%s969 + $0x20] sm:$0xff]
        %v1224 = vld [vmem:[%s969 + $0x28] sm:$0xff]
        %v1225 = vld [vmem:[%s969 + $0x30] sm:$0xff]
        %v1226 = vld [vmem:[%s969 + $0x38] sm:$0xff]
        %v1227 = vld [vmem:[%s972] sm:$0x1]
        %v1229 = vperm.slane %v1227, 0
        %v1232 = vsel %vm1189, %v1214, 0
        %v1235 = vsel %vm1189, %v1217, 0
        %1237 = vmatpush.msra.mxu0 0.0
        %1238 = vmatpush.msra.mxu0 0.0
        %1239 = vmatpush.msra.mxu0 0.0
        %1240 = vmatpush.msra.mxu0 0.0
        %1241 = vmatpush.msra.mxu0 0.0
        %1242 = vmatpush.msra.mxu0 0.0
        %1243 = vmatpush.msra.mxu0 0.0
        %1244 = vmatpush.msra.mxu0 0.0
        %1245 = vmatpush.msra.mxu0 %v1226
        %1246 = vmatpush.msra.mxu0 %v1225
        %1247 = vmatpush.msra.mxu0 %v1224
        %1248 = vmatpush.msra.mxu0 %v1223
        %1249 = vmatpush.msra.mxu0 %v1222
        %1250 = vmatpush.msra.mxu0 %v1221
        %1251 = vmatpush.msra.mxu0 %v1220
        %1252 = vmatpush.msra.mxu0 %v1219
        %1253 = vmatmul.f32.gmra.mxu0 %v1232
        %v1254 = vpop.f32.mrf.mxu0
        %v1255 = vadd.f32 %v1229, %v1254
        %1256 = vmatmul.f32.gmra.mxu0 %v1235
        %v1257 = vpop.f32.mrf.mxu0
        %v1258 = vadd.f32 %v1229, %v1257
        %1259 = vdwg.mxu0
        %v1260 = vld [vmem:[%s977] sm:$0xff]
        %v1261 = vld [vmem:[%s977 + $0x8] sm:$0xff]
        %v1262 = vld [vmem:[%s977 + $0x10] sm:$0xff]
        %v1263 = vld [vmem:[%s977 + $0x18] sm:$0xff]
        %v1264 = vld [vmem:[%s977 + $0x20] sm:$0xff]
        %v1265 = vld [vmem:[%s977 + $0x28] sm:$0xff]
        %v1266 = vld [vmem:[%s977 + $0x30] sm:$0xff]
        %v1267 = vld [vmem:[%s977 + $0x38] sm:$0xff]
        %v1268 = vld [vmem:[%s980] sm:$0x1]
        %v1270 = vperm.slane %v1268, 0
        %v1273 = vsel %vm1189, %v1011, 0
        %v1276 = vsel %vm1189, %v1012, 0
        %1278 = vmatpush.msra.mxu0 0.0
        %1279 = vmatpush.msra.mxu0 0.0
        %1280 = vmatpush.msra.mxu0 0.0
        %1281 = vmatpush.msra.mxu0 0.0
        %1282 = vmatpush.msra.mxu0 0.0
        %1283 = vmatpush.msra.mxu0 0.0
        %1284 = vmatpush.msra.mxu0 0.0
        %1285 = vmatpush.msra.mxu0 0.0
        %1286 = vmatpush.msra.mxu0 %v1267
        %1287 = vmatpush.msra.mxu0 %v1266
        %1288 = vmatpush.msra.mxu0 %v1265
        %1289 = vmatpush.msra.mxu0 %v1264
        %1290 = vmatpush.msra.mxu0 %v1263
        %1291 = vmatpush.msra.mxu0 %v1262
        %1292 = vmatpush.msra.mxu0 %v1261
        %1293 = vmatpush.msra.mxu0 %v1260
        %1294 = vmatmul.f32.gmra.mxu0 %v1273
        %v1295 = vpop.f32.mrf.mxu0
        %v1296 = vadd.f32 %v1270, %v1295
        %1297 = vmatmul.f32.gmra.mxu0 %v1276
        %v1298 = vpop.f32.mrf.mxu0
        %v1299 = vadd.f32 %v1270, %v1298
        %1300 = vdwg.mxu0
        %v1301 = vld [vmem:[%s791] sm:$0xff]
        %v1302 = vld [vmem:[%s791 + $0x8] sm:$0xff]
        %v1303 = vld [vmem:[%s791 + $0x10] sm:$0xff]
        %v1304 = vld [vmem:[%s791 + $0x18] sm:$0xff]
        %v1305 = vld [vmem:[%s791 + $0x20] sm:$0xff]
        %v1306 = vld [vmem:[%s791 + $0x28] sm:$0xff]
        %v1307 = vld [vmem:[%s791 + $0x30] sm:$0xff]
        %v1308 = vld [vmem:[%s791 + $0x38] sm:$0xff]
        %v1309 = vld [vmem:[%s983] sm:$0x1]
        %v1311 = vperm.slane %v1309, 0
        %v1314 = vsel %vm1189, %v1296, 0
        %v1317 = vsel %vm1189, %v1299, 0
        %1319 = vmatpush.msra.mxu0 0.0
        %1320 = vmatpush.msra.mxu0 0.0
        %1321 = vmatpush.msra.mxu0 0.0
        %1322 = vmatpush.msra.mxu0 0.0
        %1323 = vmatpush.msra.mxu0 0.0
        %1324 = vmatpush.msra.mxu0 0.0
        %1325 = vmatpush.msra.mxu0 0.0
        %1326 = vmatpush.msra.mxu0 0.0
        %1327 = vmatpush.msra.mxu0 %v1308
        %1328 = vmatpush.msra.mxu0 %v1307
        %1329 = vmatpush.msra.mxu0 %v1306
        %1330 = vmatpush.msra.mxu0 %v1305
        %1331 = vmatpush.msra.mxu0 %v1304
        %1332 = vmatpush.msra.mxu0 %v1303
        %1333 = vmatpush.msra.mxu0 %v1302
        %1334 = vmatpush.msra.mxu0 %v1301
        %1335 = vmatmul.f32.gmra.mxu0 %v1314
        %v1336 = vpop.f32.mrf.mxu0
        %v1337 = vadd.f32 %v1311, %v1336
        %1338 = vmatmul.f32.gmra.mxu0 %v1317
        %v1339 = vpop.f32.mrf.mxu0
        %v1340 = vadd.f32 %v1311, %v1339
        %1341 = vdwg.mxu0
        %1344 = vrot.lane.b32.xlu0 %v1337, 64
        %v1345 = vpop.permute.xlu0 %1344
        %1346 = vrot.lane.b32.xlu0 %v1340, 64
        %v1347 = vpop.permute.xlu0 %1346
        %v1350 = vsel %vm1189, %v1255, %v1345
        %v1351 = vsel %vm1189, %v1258, %v1347
        %v1352 = vld [vmem:[%s988] sm:$0xff]
        %v1353 = vld [vmem:[%s988 + $0x8] sm:$0xff]
        %v1354 = vld [vmem:[%s988 + $0x10] sm:$0xff]
        %v1355 = vld [vmem:[%s988 + $0x18] sm:$0xff]
        %v1356 = vld [vmem:[%s988 + $0x20] sm:$0xff]
        %v1357 = vld [vmem:[%s988 + $0x28] sm:$0xff]
        %v1358 = vld [vmem:[%s988 + $0x30] sm:$0xff]
        %v1359 = vld [vmem:[%s988 + $0x38] sm:$0xff]
        %v1360 = vld [vmem:[%s988 + $0x40] sm:$0xff]
        %v1361 = vld [vmem:[%s988 + $0x48] sm:$0xff]
        %v1362 = vld [vmem:[%s988 + $0x50] sm:$0xff]
        %v1363 = vld [vmem:[%s988 + $0x58] sm:$0xff]
        %v1364 = vld [vmem:[%s988 + $0x60] sm:$0xff]
        %v1365 = vld [vmem:[%s988 + $0x68] sm:$0xff]
        %v1366 = vld [vmem:[%s988 + $0x70] sm:$0xff]
        %v1367 = vld [vmem:[%s988 + $0x78] sm:$0xff]
        %v1368 = vld [vmem:[%s991] sm:$0x1]
        %v1370 = vperm.slane %v1368, 0
        %1372 = vmatpush.msra.mxu0 %v1367
        %1373 = vmatpush.msra.mxu0 %v1366
        %1374 = vmatpush.msra.mxu0 %v1365
        %1375 = vmatpush.msra.mxu0 %v1364
        %1376 = vmatpush.msra.mxu0 %v1363
        %1377 = vmatpush.msra.mxu0 %v1362
        %1378 = vmatpush.msra.mxu0 %v1361
        %1379 = vmatpush.msra.mxu0 %v1360
        %1380 = vmatpush.msra.mxu0 %v1359
        %1381 = vmatpush.msra.mxu0 %v1358
        %1382 = vmatpush.msra.mxu0 %v1357
        %1383 = vmatpush.msra.mxu0 %v1356
        %1384 = vmatpush.msra.mxu0 %v1355
        %1385 = vmatpush.msra.mxu0 %v1354
        %1386 = vmatpush.msra.mxu0 %v1353
        %1387 = vmatpush.msra.mxu0 %v1352
        %1388 = vmatmul.f32.gmra.mxu0 %v1350
        %v1389 = vpop.f32.mrf.mxu0
        %v1390 = vadd.f32 %v1370, %v1389
        %1391 = vmatmul.f32.gmra.mxu0 %v1351
        %v1392 = vpop.f32.mrf.mxu0
        %v1393 = vadd.f32 %v1370, %v1392
        %1394 = vdwg.mxu0
        %v1395 = vxor.u32 %v1390, 2147483648
        %v1396 = vxor.u32 %v1393, 2147483648
        %v1397 = vmul.f32 %v1395, 1.442695
        %v1398 = vpow.pop %v1397
        %v1399 = vmul.f32 %v1396, 1.442695
        %v1400 = vpow.pop %v1399
        %v1401 = vadd.f32 %v1398, 1.0
        %v1402 = vadd.f32 %v1400, 1.0
        %v1403 = vrcp.pop %v1401
        %v1404 = vmul.f32 %v1401, %v1403
        %v1405 = vsub.f32 1.0, %v1404
        %v1406 = vmul.f32 %v1403, %v1405
        %v1407 = vadd.f32 %v1403, %v1406
        %vm1408 = vweird.f32 %v1401
        %vm1409 = vweird.f32 %v1403
        %vm1410 = vmor %vm1408, %vm1409
        %v1411 = vsel %vm1410, %v1403, %v1407
        %v1412 = vand.u32 2147483647, %v1401
        %vm1413 = vcmp.eq.f32.partialorder %v1412, 8.507059e+37
        %v1414 = vand.u32 %v1401, 2147483648
        %v1415 = vor.u32 1.1754944e-38, %v1414
        %v1416 = vsel %vm1413, %v1415, %v1411
        %v1417 = vmul.f32 1.0, %v1416
        %v1418 = vrcp.pop %v1402
        %v1419 = vmul.f32 %v1402, %v1418
        %v1420 = vsub.f32 1.0, %v1419
        %v1421 = vmul.f32 %v1418, %v1420
        %v1422 = vadd.f32 %v1418, %v1421
        %vm1423 = vweird.f32 %v1402
        %vm1424 = vweird.f32 %v1418
        %vm1425 = vmor %vm1423, %vm1424
        %v1426 = vsel %vm1425, %v1418, %v1422
        %v1427 = vand.u32 2147483647, %v1402
        %vm1428 = vcmp.eq.f32.partialorder %v1427, 8.507059e+37
        %v1429 = vand.u32 %v1402, 2147483648
        %v1430 = vor.u32 1.1754944e-38, %v1429
        %v1431 = vsel %vm1428, %v1430, %v1426
        %v1432 = vmul.f32 1.0, %v1431
        %v1433 = vmul.f32 %v1417, %v1337
        %v1434 = vmul.f32 %v1432, %v1340
        %v1435 = vadd.f32 %v1011, %v1433
        %v1436 = vadd.f32 %v1012, %v1434
        %v1437 = vld [vmem:[%s801] sm:$0xff]
        %v1438 = vld [vmem:[%s801 + $0x8] sm:$0xff]
        %v1439 = vld [vmem:[%s801 + $0x10] sm:$0xff]
        %v1440 = vld [vmem:[%s801 + $0x18] sm:$0xff]
        %v1441 = vld [vmem:[%s801 + $0x20] sm:$0xff]
        %v1442 = vld [vmem:[%s801 + $0x28] sm:$0xff]
        %v1443 = vld [vmem:[%s801 + $0x30] sm:$0xff]
        %v1444 = vld [vmem:[%s801 + $0x38] sm:$0xff]
        %v1445 = vld [vmem:[%s994] sm:$0x1]
        %v1447 = vperm.slane %v1445, 0
        %v1450 = vsel %vm1189, %v1435, 0
        %v1453 = vsel %vm1189, %v1436, 0
        %1455 = vmatpush.msra.mxu0 0.0
        %1456 = vmatpush.msra.mxu0 0.0
        %1457 = vmatpush.msra.mxu0 0.0
        %1458 = vmatpush.msra.mxu0 0.0
        %1459 = vmatpush.msra.mxu0 0.0
        %1460 = vmatpush.msra.mxu0 0.0
        %1461 = vmatpush.msra.mxu0 0.0
        %1462 = vmatpush.msra.mxu0 0.0
        %1463 = vmatpush.msra.mxu0 %v1444
        %1464 = vmatpush.msra.mxu0 %v1443
        %1465 = vmatpush.msra.mxu0 %v1442
        %1466 = vmatpush.msra.mxu0 %v1441
        %1467 = vmatpush.msra.mxu0 %v1440
        %1468 = vmatpush.msra.mxu0 %v1439
        %1469 = vmatpush.msra.mxu0 %v1438
        %1470 = vmatpush.msra.mxu0 %v1437
        %1471 = vmatmul.f32.gmra.mxu0 %v1450
        %v1472 = vpop.f32.mrf.mxu0
        %v1473 = vadd.f32 %v1447, %v1472
        %1474 = vmatmul.f32.gmra.mxu0 %v1453
        %v1475 = vpop.f32.mrf.mxu0
        %v1476 = vadd.f32 %v1447, %v1475
        %1477 = vdwg.mxu0
        %v1478 = vxor.u32 %v1473, 2147483648
        %v1479 = vxor.u32 %v1476, 2147483648
        %v1480 = vmul.f32 %v1478, 1.442695
        %v1481 = vpow.pop %v1480
        %v1482 = vmul.f32 %v1479, 1.442695
        %v1483 = vpow.pop %v1482
        %v1484 = vadd.f32 %v1481, 1.0
        %v1485 = vadd.f32 %v1483, 1.0
        %v1486 = vrcp.pop %v1484
        %v1487 = vmul.f32 %v1484, %v1486
        %v1488 = vsub.f32 1.0, %v1487
        %v1489 = vmul.f32 %v1486, %v1488
        %v1490 = vadd.f32 %v1486, %v1489
        %vm1491 = vweird.f32 %v1484
        %vm1492 = vweird.f32 %v1486
        %vm1493 = vmor %vm1491, %vm1492
        %v1494 = vsel %vm1493, %v1486, %v1490
        %v1495 = vand.u32 2147483647, %v1484
        %vm1496 = vcmp.eq.f32.partialorder %v1495, 8.507059e+37
        %v1497 = vand.u32 %v1484, 2147483648
        %v1498 = vor.u32 1.1754944e-38, %v1497
        %v1499 = vsel %vm1496, %v1498, %v1494
        %v1500 = vmul.f32 1.0, %v1499
        %v1501 = vrcp.pop %v1485
        %v1502 = vmul.f32 %v1485, %v1501
        %v1503 = vsub.f32 1.0, %v1502
        %v1504 = vmul.f32 %v1501, %v1503
        %v1505 = vadd.f32 %v1501, %v1504
        %vm1506 = vweird.f32 %v1485
        %vm1507 = vweird.f32 %v1501
        %vm1508 = vmor %vm1506, %vm1507
        %v1509 = vsel %vm1508, %v1501, %v1505
        %v1510 = vand.u32 2147483647, %v1485
        %vm1511 = vcmp.eq.f32.partialorder %v1510, 8.507059e+37
        %v1512 = vand.u32 %v1485, 2147483648
        %v1513 = vor.u32 1.1754944e-38, %v1512
        %v1514 = vsel %vm1511, %v1513, %v1509
        %v1515 = vmul.f32 1.0, %v1514
        %1518 = vrot.lane.b32.xlu0 %v1500, 64
        %v1519 = vpop.permute.xlu0 %1518
        %1520 = vrot.lane.b32.xlu0 %v1515, 64
        %v1521 = vpop.permute.xlu0 %1520
        %v1524 = vmul.f32 %v1473, %v1519
        %v1525 = vmul.f32 %v1476, %v1521
        %v1526 = vsel %vm1189, %v1524, 0.0
        %1527 = vadd.xlane.f32.xlu0 %v1526
        %v1528 = vpop.xlane.xlu0 %1527
        %v1529 = vsel %vm1189, %v1525, 0.0
        %1530 = vadd.xlane.f32.xlu0 %v1529
        %v1531 = vpop.xlane.xlu0 %1530
        %v1532 = vrcp.pop 64.0
        %v1533 = vmul.f32 64.0, %v1532
        %v1534 = vsub.f32 1.0, %v1533
        %v1535 = vmul.f32 %v1532, %v1534
        %v1536 = vadd.f32 %v1532, %v1535
        %vm1537 = vweird.f32 %v1532
        %v1538 = vsel %vm1537, %v1532, %v1536
        %v1539 = vmul.f32 %v1528, %v1538
        %v1540 = vmul.f32 %v1531, %v1538
        %v1541 = vmul.f32 %v1524, %v1524
        %v1542 = vmul.f32 %v1525, %v1525
        %v1543 = vsel %vm1189, %v1541, 0.0
        %1544 = vadd.xlane.f32.xlu0 %v1543
        %v1545 = vpop.xlane.xlu0 %1544
        %v1546 = vsel %vm1189, %v1542, 0.0
        %1547 = vadd.xlane.f32.xlu0 %v1546
        %v1548 = vpop.xlane.xlu0 %1547
        %v1549 = vmul.f32 %v1545, %v1538
        %v1550 = vmul.f32 %v1548, %v1538
        %v1551 = vmul.f32 %v1539, %v1539
        %v1552 = vmul.f32 %v1540, %v1540
        %v1553 = vsub.f32 %v1549, %v1551
        %v1554 = vsub.f32 %v1550, %v1552
        %v1555 = vsub.f32 %v1524, %v1539
        %v1556 = vsub.f32 %v1525, %v1540
        %v1557 = vadd.f32 %v1553, 1e-05
        %v1558 = vadd.f32 %v1554, 1e-05
        %v1559 = vrsqrt.pop %v1557
        %v1560 = vmul.f32 %v1559, %v1557
        %v1561 = vmul.f32 %v1560, %v1559
        %v1562 = vmul.f32 0.5, %v1561
        %v1563 = vsub.f32 1.5, %v1562
        %v1564 = vmul.f32 %v1559, %v1563
        %vm1565 = vweird.f32 %v1557
        %vm1566 = vweird.f32 %v1559
        %vm1567 = vmor %vm1565, %vm1566
        %v1568 = vsel %vm1567, %v1559, %v1564
        %v1569 = vrsqrt.pop %v1558
        %v1570 = vmul.f32 %v1569, %v1558
        %v1571 = vmul.f32 %v1570, %v1569
        %v1572 = vmul.f32 0.5, %v1571
        %v1573 = vsub.f32 1.5, %v1572
        %v1574 = vmul.f32 %v1569, %v1573
        %vm1575 = vweird.f32 %v1558
        %vm1576 = vweird.f32 %v1569
        %vm1577 = vmor %vm1575, %vm1576
        %v1578 = vsel %vm1577, %v1569, %v1574
        %v1579 = vmul.f32 %v1555, %v1568
        %v1580 = vmul.f32 %v1556, %v1578
        %v1581 = vld [vmem:[%s997] sm:$0x1]
        %v1583 = vperm.slane %v1581, 0
        %v1585 = vmul.f32 %v1579, %v1583
        %v1586 = vmul.f32 %v1580, %v1583
        %v1587 = vld [vmem:[%s1000] sm:$0x1]
        %v1589 = vperm.slane %v1587, 0
        %v1591 = vadd.f32 %v1585, %v1589
        %v1592 = vadd.f32 %v1586, %v1589
        %1593 = vst.msk [vmem:[#allocation7] sm:$0xff] %vm1189, %v1591
        %1594 = vst.msk [vmem:[#allocation7 + $0x8] sm:$0xff] %vm1189, %v1592
        // Predicated region
        $region113: #{tpu_custom_call.1} parent=99 // pred_check
          %p1595 = pneg %p588
        $region114: #{tpu_custom_call.1} parent=99 // pred_check_branch
          %1597 = sbr.rel (%p1595) target = $region116
        $region115: #{tpu_custom_call.1} parent=99 // pred_region
          %s1598 = smul.u32 2, %s42
          %1600 = vsyncadd [#allocation4], 0
          %s1601 = smul.addr %s1598, 8
          %s1602 = scalar_lea.hbm %s20, %s1601
          %s1603 = sshll.u32 [#allocation7], 4
          %s1604 = int_to_ptr.vmem [resolvable:$true] %s1603
          %s1605 = sshll.u32 %s1602, 4
          %s1606 = int_to_ptr.hbm [resolvable:$true] %s1605
          %1611 = dma.vmem_to_hbm [thread:$0]  %s1604, 256, %s1606, [#allocation4], 128, 128, 8
        $region116: #{tpu_custom_call.1} parent=99 // pred_fallthru
          _
        // Predicated region
        $region117: #{tpu_custom_call.1} parent=99 // pred_check
          %p1612 = pneg %p588
        $region118: #{tpu_custom_call.1} parent=99 // pred_check_branch
          %1614 = sbr.rel (%p1612) target = $region120
        $region119: #{tpu_custom_call.1} parent=99 // pred_region
          %1616 = dma.done [#allocation4], 256
        $region120: #{tpu_custom_call.1} parent=99 // pred_fallthru
          _
      $region100: #{tpu_custom_call.1} parent=5 // pred_fallthru
        _
      %p1617 = scmp.le.s32.totalorder 2, %s33
      // Predicated region
      $region121: #{tpu_custom_call.1} parent=5 // pred_check
        %p1618 = pneg %p1617
      $region122: #{tpu_custom_call.1} parent=5 // pred_check_branch
        %1620 = sbr.rel (%p1618) target = $region124
      $region123: #{tpu_custom_call.1} parent=5 // pred_region
        %s1621 = ssub.s32 %s33, 2
      $region124: #{tpu_custom_call.1} parent=5 // pred_fallthru
        _
    $region6: #{tpu_custom_call.1} parent=1 // loop_footer
      %s37 = sadd.s32 1, %s33
    $region7: #{tpu_custom_call.1} parent=1 // loop_footer_branch
      %32 = sbr.rel target = $region3
    $region8: #{tpu_custom_call.1} parent=1 // loop_exit
      _
    %1622 = vsyncpa [#allocation3], 1
    %s1623 = scalar_lea.sflag [#allocation3], 1
    %1624 = vsyncpa %s1623, 1
    %1625 = vsyncpa [#allocation6], 1
    %s1626 = scalar_lea.sflag [#allocation6], 1
    %1627 = vsyncpa %s1626, 1
    %1628 = vsyncpa [#allocation4], 1
    %s1629 = scalar_lea.sflag [#allocation4], 1
    %1630 = vsyncpa %s1629, 1

</llo_original>
